<compile_context>
chip_gen: v7x
topology: tpu7x:2x2x1
jax: 0.10.0
libtpu: 0.0.40
codegen_flags: <defaults>
</compile_context>

<pallas_src>
import functools

import jax
import jax.numpy as jnp
from jax import lax
from jax.experimental import pallas as pl
from jax.experimental.pallas import tpu as pltpu

BN_EPS = 1e-5


def _round_up(x, m):
    return ((x + m - 1) // m) * m


# ---------------------------------------------------------------------------------------------
# Fused kernel: [Conv2d(1x1) -> ReLU -> (folded) BatchNorm]* -> ConvTranspose2d (phase form) -> ReLU
# Layout everywhere: (channels, flat pixels) with pixels on the 128-lane axis.
# ---------------------------------------------------------------------------------------------
def _fused_decoder_kernel(n_layers, Kp, H, W, Wpad, ssc_pad, x_ref, *refs):
    # refs = [w0, b0, ..., w_{L-1}, b_{L-1}, scale, shift, w_taps, b_taps, out_ref, zp_ref]
    zp_ref = refs[-1]
    out_ref = refs[-2]
    btap_ref = refs[-3]
    wtap_ref = refs[-4]
    shift_ref = refs[-5]
    scale_ref = refs[-6]

    # ---- pointwise stack: bf16 MXU inputs, f32 accumulation -----------------------------------
    y = x_ref[...].astype(jnp.bfloat16)                       # (C_f, H*W)
    act = None
    for li in range(n_layers):
        w_ref, b_ref = refs[2 * li], refs[2 * li + 1]
        act = jnp.dot(w_ref[...], y, preferred_element_type=jnp.float32) + b_ref[...]
        act = jnp.maximum(act, 0.0)                           # ReLU(inplace=True)
        y = act.astype(jnp.bfloat16)                          # MXU input of the next layer
    z = act * scale_ref[...] + shift_ref[...]                 # last layer's BatchNorm (inference)

    # ---- build the zero-padded flat z (row stride Wpad) entirely in VMEM ----------------------
    zp_ref[...] = jnp.zeros(zp_ref.shape, zp_ref.dtype)
    for h in range(H):                                        # H static slice-copies (VMEM only)
        dst = (Kp - 1 + h) * Wpad + (Kp - 1)
        zp_ref[:, dst:dst + W] = z[:, h * W:(h + 1) * W]

    # ---- phase-decomposed ConvTranspose2d: accumulate over the Kp*Kp taps ----------------------
    # out[(ph,pw,co), y*Wpad+x] = sum_{m,l,ci} W[(ph,pw,co),(m,l,ci)] * zp[ci, (y+m)*Wpad + (x+l)]
    p_out = out_ref.shape[-1]
    acc = jnp.broadcast_to(btap_ref[...], (ssc_pad, p_out))
    for t in range(Kp * Kp):
        m, l = t // Kp, t % Kp
        d = m * Wpad + l
        w_t = wtap_ref[t * ssc_pad:(t + 1) * ssc_pad, :]      # (ssc_pad, C_i) bf16
        z_t = zp_ref[:, d:d + p_out].astype(jnp.bfloat16)     # (C_i, p_out)  shifted view
        acc = acc + jnp.dot(w_t, z_t, preferred_element_type=jnp.float32)
    out_ref[...] = jnp.maximum(acc, 0.0).astype(out_ref.dtype)   # final ReLU


# ---------------------------------------------------------------------------------------------
# Full ConvDecoder forward.
# ---------------------------------------------------------------------------------------------
def conv_decoder_forward(x_nchw, params, *, kernel_size, stride):
    N, c_f, H, W = x_nchw.shape
    K, S = kernel_size, stride
    Kp = -(-K // S)                        # taps per axis per phase
    Kpad = Kp * S
    Hp, Wp = H + Kp - 1, W + Kp - 1        # per-phase output extent
    Hpad, Wpad = H + 2 * (Kp - 1), W + 2 * (Kp - 1)
    OH, OW = (H - 1) * S + K, (W - 1) * S + K

    wt, bt = params["convT"]
    c_img = wt.shape[1]
    ssc = S * S * c_img
    ssc_pad = _round_up(ssc, 8)            # unmasked sublane stores
    p_full = Hpad * Wpad
    p_out = _round_up(p_full, 128)         # lane-dense output block
    d_max = (Kp - 1) * Wpad + (Kp - 1)
    p_ext = _round_up(p_out + d_max, 128)  # scratch length so every tap slice is in-bounds

    # fold BN_i (inference) into conv_{i+1}; last layer keeps explicit per-channel scale/shift.
    layers = []
    prev_s = prev_t = None
    for (w, b, gamma, beta, rmean, rvar) in params["pointwise"]:
        s = gamma / jnp.sqrt(rvar + BN_EPS)
        t = beta - rmean * s
        if prev_s is None:
            w_eff, b_eff = w, b
        else:
            w_eff = w * prev_s[None, :]                   # scale input channels
            b_eff = w @ prev_t + b
        layers.append((w_eff.astype(jnp.bfloat16), b_eff[:, None].astype(jnp.float32)))
        prev_s, prev_t = s, t
    scale = prev_s[:, None].astype(jnp.float32)
    shift = prev_t[:, None].astype(jnp.float32)
    c_i = scale.shape[0]

    # convT weights: zero-pad taps to Kpad, regroup into (tap m,l) x (phase ph,pw, out-channel),
    # flip the tap axes.  Per-tap blocks are stacked row-wise into one (Kp*Kp*ssc_pad, C_i) matrix.
    wt_p = jnp.pad(wt, ((0, 0), (0, 0), (0, Kpad - K), (0, Kpad - K)))
    w_r = wt_p.reshape(c_i, c_img, Kp, S, Kp, S)          # [ci, co, a, ph, b, pw]
    w_f = jnp.flip(w_r, axis=(2, 4))                      # [ci, co, m, ph, l, pw]
    w_taps = jnp.transpose(w_f, (2, 4, 3, 5, 1, 0)).reshape(Kp * Kp, ssc, c_i)
    w_taps = jnp.pad(w_taps, ((0, 0), (0, ssc_pad - ssc), (0, 0)))
    w_taps = w_taps.reshape(Kp * Kp * ssc_pad, c_i).astype(jnp.bfloat16)
    b_taps = jnp.pad(jnp.tile(bt, S * S), (0, ssc_pad - ssc))[:, None].astype(jnp.float32)

    x3 = x_nchw.reshape(N, c_f, H * W)                    # free reshape; no transpose, no pad

    args = [x3]
    in_specs = [pl.BlockSpec((None, c_f, H * W), lambda n: (n, 0, 0))]
    for (w, b) in layers:
        args += [w, b]
        in_specs += [pl.BlockSpec(w.shape, lambda n: (0, 0)),
                     pl.BlockSpec(b.shape, lambda n: (0, 0))]
    args += [scale, shift, w_taps, b_taps]
    in_specs += [pl.BlockSpec(scale.shape, lambda n: (0, 0)),
                 pl.BlockSpec(shift.shape, lambda n: (0, 0)),
                 pl.BlockSpec(w_taps.shape, lambda n: (0, 0)),
                 pl.BlockSpec(b_taps.shape, lambda n: (0, 0))]

    out = pl.pallas_call(
        functools.partial(_fused_decoder_kernel, len(layers), Kp, H, W, Wpad, ssc_pad),
        out_shape=jax.ShapeDtypeStruct((N, ssc_pad, p_out), jnp.float32),
        grid=(N,),
        in_specs=in_specs,
        out_specs=pl.BlockSpec((None, ssc_pad, p_out), lambda n: (n, 0, 0)),
        scratch_shapes=[pltpu.VMEM((c_i, p_ext), jnp.float32)],
        compiler_params=pltpu.CompilerParams(dimension_semantics=("parallel",)),
    )(*args)

    # de-interleave phases back into NCHW; all crops are fused into this single XLA transpose.
    o = out[:, :ssc, :p_full].reshape(N, S, S, c_img, Hpad, Wpad)[:, :, :, :, :Hp, :Wp]
    o = jnp.transpose(o, (0, 3, 4, 1, 5, 2)).reshape(N, c_img, Hp * S, Wp * S)
    return o[:, :, :OH, :OW]


# ---------------------------------------------------------------------------------------------
# Deterministic parameter init (shapes follow ConvDecoder.__init__).
# ---------------------------------------------------------------------------------------------
def init_params(key, kernel_size, hidden_layers, initial_channels,
                final_channels, input_channels=3):
    params = {"pointwise": []}
    n_layers = hidden_layers + 1
    for j in range(n_layers):
        c_in = final_channels
        c_out = final_channels if j < hidden_layers else initial_channels
        key, k1, k2, k3, k4, k5, k6 = jax.random.split(key, 7)
        w = jax.random.normal(k1, (c_out, c_in), jnp.float32) / jnp.sqrt(c_in)
        b = 0.1 * jax.random.normal(k2, (c_out,), jnp.float32)
        gamma = 1.0 + 0.1 * jax.random.normal(k3, (c_out,), jnp.float32)
        beta = 0.1 * jax.random.normal(k4, (c_out,), jnp.float32)
        rmean = 0.1 * jax.random.normal(k5, (c_out,), jnp.float32)
        rvar = jax.random.uniform(k6, (c_out,), jnp.float32, 0.5, 1.5)
        params["pointwise"].append((w, b, gamma, beta, rmean, rvar))
    key, k1, k2 = jax.random.split(key, 3)
    wt = 0.1 * jax.random.normal(
        k1, (initial_channels, input_channels, kernel_size, kernel_size), jnp.float32)
    bt = 0.1 * jax.random.normal(k2, (input_channels,), jnp.float32)
    params["convT"] = (wt, bt)
    return params


# ---------------------------------------------------------------------------------------------
# Pure-JAX (XLA) f32 reference with identical semantics, for validation.
# ---------------------------------------------------------------------------------------------
def reference_forward(x_nchw, params, *, kernel_size, stride):
    y = jnp.transpose(x_nchw, (0, 2, 3, 1))               # NHWC
    for (w, b, gamma, beta, rmean, rvar) in params["pointwise"]:
        y = jnp.einsum("nhwc,oc->nhwo", y, w) + b
        y = jnp.maximum(y, 0.0)
        y = (y - rmean) / jnp.sqrt(rvar + BN_EPS) * gamma + beta
    z = jnp.transpose(y, (0, 3, 1, 2))                     # NCHW
    wt, bt = params["convT"]
    K, S = kernel_size, stride
    w_flip = jnp.transpose(jnp.flip(wt, axis=(2, 3)), (1, 0, 2, 3))   # (Cout, Cin, K, K)
    out = lax.conv_general_dilated(
        z, w_flip, window_strides=(1, 1),
        padding=((K - 1, K - 1), (K - 1, K - 1)),
        lhs_dilation=(S, S), rhs_dilation=(1, 1),
        dimension_numbers=("NCHW", "OIHW", "NCHW"))
    out = out + bt[None, :, None, None]
    return jnp.maximum(out, 0.0)


if __name__ == "__main__":
    kernel_size, hidden_layers = 4, 2
    initial_channels, final_channels, input_channels = 8, 32, 3
    stride = int(kernel_size / 2)
    N, H, W = 2, 16, 16

    key = jax.random.PRNGKey(0)
    kx, kp = jax.random.split(key)
    x = jax.random.normal(kx, (N, final_channels, H, W), jnp.float32)
    params = init_params(kp, kernel_size, hidden_layers, initial_channels,
                         final_channels, input_channels)

    fwd = jax.jit(functools.partial(conv_decoder_forward,
                                    kernel_size=kernel_size, stride=stride))
    out = jax.block_until_ready(fwd(x, params))

    OH = (H - 1) * stride + kernel_size
    assert out.shape == (N, input_channels, OH, OH), out.shape

    ref = jax.block_until_ready(
        reference_forward(x, params, kernel_size=kernel_size, stride=stride))
    max_err = float(jnp.max(jnp.abs(out - ref)))
    # bf16 MXU inputs throughout (x, inter-layer activations, folded weights) + BN folding
    # -> bf16-level tolerance vs the pure-f32 reference.
    assert max_err < 1e-1, f"mismatch vs reference: {max_err}"

    print("KERNEL_OK")
</pallas_src>

<mosaic_0001>
module attributes {stable_mosaic.version = 11 : i64} {
  func.func @_fused_decoder_kernel(%arg0: i32, %arg1: memref<1x32x256xf32, #tpu.memory_space<vmem>>, %arg2: memref<32x32xbf16, #tpu.memory_space<vmem>>, %arg3: memref<32x1xf32, #tpu.memory_space<vmem>>, %arg4: memref<32x32xbf16, #tpu.memory_space<vmem>>, %arg5: memref<32x1xf32, #tpu.memory_space<vmem>>, %arg6: memref<8x32xbf16, #tpu.memory_space<vmem>>, %arg7: memref<8x1xf32, #tpu.memory_space<vmem>>, %arg8: memref<8x1xf32, #tpu.memory_space<vmem>>, %arg9: memref<8x1xf32, #tpu.memory_space<vmem>>, %arg10: memref<64x8xbf16, #tpu.memory_space<vmem>>, %arg11: memref<16x1xf32, #tpu.memory_space<vmem>>, %arg12: memref<1x16x384xf32, #tpu.memory_space<vmem>>, %arg13: memref<8x512xf32, #tpu.memory_space<vmem>>) attributes {dimension_semantics = [#tpu.dimension_semantics<parallel>], iteration_bounds = array<i64: 2>, scalar_prefetch = 0 : i64, scratch_operands = 1 : i64, tpu.core_type = #tpu.core_type<tc>, window_params = [{transform_indices = @transform_0, window_bounds = array<i64: 1, 32, 256>}, {pipeline_mode = #tpu.pipeline_mode<synchronous>, transform_indices = @transform_1, window_bounds = array<i64: 32, 32>}, {pipeline_mode = #tpu.pipeline_mode<synchronous>, transform_indices = @transform_2, window_bounds = array<i64: 32, 1>}, {pipeline_mode = #tpu.pipeline_mode<synchronous>, transform_indices = @transform_3, window_bounds = array<i64: 32, 32>}, {pipeline_mode = #tpu.pipeline_mode<synchronous>, transform_indices = @transform_4, window_bounds = array<i64: 32, 1>}, {pipeline_mode = #tpu.pipeline_mode<synchronous>, transform_indices = @transform_5, window_bounds = array<i64: 8, 32>}, {pipeline_mode = #tpu.pipeline_mode<synchronous>, transform_indices = @transform_6, window_bounds = array<i64: 8, 1>}, {pipeline_mode = #tpu.pipeline_mode<synchronous>, transform_indices = @transform_7, window_bounds = array<i64: 8, 1>}, {pipeline_mode = #tpu.pipeline_mode<synchronous>, transform_indices = @transform_8, window_bounds = array<i64: 8, 1>}, {pipeline_mode = #tpu.pipeline_mode<synchronous>, transform_indices = @transform_9, window_bounds = array<i64: 64, 8>}, {pipeline_mode = #tpu.pipeline_mode<synchronous>, transform_indices = @transform_10, window_bounds = array<i64: 16, 1>}, {transform_indices = @transform_11, window_bounds = array<i64: 1, 16, 384>}]} {
    %c0 = arith.constant 0 : index
    %c0_0 = arith.constant 0 : index
    %c0_1 = arith.constant 0 : index
    %0 = vector.load %arg1[%c0, %c0_0, %c0_1] : memref<1x32x256xf32, #tpu.memory_space<vmem>>, vector<1x32x256xf32>
    %1 = vector.shape_cast %0 : vector<1x32x256xf32> to vector<32x256xf32>
    %2 = arith.truncf %1 : vector<32x256xf32> to vector<32x256xbf16>
    %c0_2 = arith.constant 0 : index
    %c0_3 = arith.constant 0 : index
    %3 = vector.load %arg2[%c0_2, %c0_3] : memref<32x32xbf16, #tpu.memory_space<vmem>>, vector<32x32xbf16>
    %cst = arith.constant dense<0.000000e+00> : vector<32x256xf32>
    %4 = tpu.matmul %3, %2, %cst {dimension_numbers = #tpu.dot_dimension_numbers<[1], [0], [0], [1], [0, 0, 1, 1], [], []>} : vector<32x32xbf16>, vector<32x256xbf16>, vector<32x256xf32> -> vector<32x256xf32>
    %c0_4 = arith.constant 0 : index
    %c0_5 = arith.constant 0 : index
    %5 = vector.load %arg3[%c0_4, %c0_5] : memref<32x1xf32, #tpu.memory_space<vmem>>, vector<32x1xf32>
    %6 = vector.broadcast %5 : vector<32x1xf32> to vector<32x256xf32>
    %7 = arith.addf %4, %6 : vector<32x256xf32>
    %cst_6 = arith.constant 0.000000e+00 : f32
    %8 = vector.broadcast %cst_6 : f32 to vector<32x256xf32>
    %9 = arith.maximumf %7, %8 : vector<32x256xf32>
    %10 = arith.truncf %9 : vector<32x256xf32> to vector<32x256xbf16>
    %c0_7 = arith.constant 0 : index
    %c0_8 = arith.constant 0 : index
    %11 = vector.load %arg4[%c0_7, %c0_8] : memref<32x32xbf16, #tpu.memory_space<vmem>>, vector<32x32xbf16>
    %cst_9 = arith.constant dense<0.000000e+00> : vector<32x256xf32>
    %12 = tpu.matmul %11, %10, %cst_9 {dimension_numbers = #tpu.dot_dimension_numbers<[1], [0], [0], [1], [0, 0, 1, 1], [], []>} : vector<32x32xbf16>, vector<32x256xbf16>, vector<32x256xf32> -> vector<32x256xf32>
    %c0_10 = arith.constant 0 : index
    %c0_11 = arith.constant 0 : index
    %13 = vector.load %arg5[%c0_10, %c0_11] : memref<32x1xf32, #tpu.memory_space<vmem>>, vector<32x1xf32>
    %14 = vector.broadcast %13 : vector<32x1xf32> to vector<32x256xf32>
    %15 = arith.addf %12, %14 : vector<32x256xf32>
    %cst_12 = arith.constant 0.000000e+00 : f32
    %16 = vector.broadcast %cst_12 : f32 to vector<32x256xf32>
    %17 = arith.maximumf %15, %16 : vector<32x256xf32>
    %18 = arith.truncf %17 : vector<32x256xf32> to vector<32x256xbf16>
    %c0_13 = arith.constant 0 : index
    %c0_14 = arith.constant 0 : index
    %19 = vector.load %arg6[%c0_13, %c0_14] : memref<8x32xbf16, #tpu.memory_space<vmem>>, vector<8x32xbf16>
    %cst_15 = arith.constant dense<0.000000e+00> : vector<8x256xf32>
    %20 = tpu.matmul %19, %18, %cst_15 {dimension_numbers = #tpu.dot_dimension_numbers<[1], [0], [0], [1], [0, 0, 1, 1], [], []>} : vector<8x32xbf16>, vector<32x256xbf16>, vector<8x256xf32> -> vector<8x256xf32>
    %c0_16 = arith.constant 0 : index
    %c0_17 = arith.constant 0 : index
    %21 = vector.load %arg7[%c0_16, %c0_17] : memref<8x1xf32, #tpu.memory_space<vmem>>, vector<8x1xf32>
    %22 = vector.broadcast %21 : vector<8x1xf32> to vector<8x256xf32>
    %23 = arith.addf %20, %22 : vector<8x256xf32>
    %cst_18 = arith.constant 0.000000e+00 : f32
    %24 = vector.broadcast %cst_18 : f32 to vector<8x256xf32>
    %25 = arith.maximumf %23, %24 : vector<8x256xf32>
    %c0_19 = arith.constant 0 : index
    %c0_20 = arith.constant 0 : index
    %26 = vector.load %arg8[%c0_19, %c0_20] : memref<8x1xf32, #tpu.memory_space<vmem>>, vector<8x1xf32>
    %27 = vector.broadcast %26 : vector<8x1xf32> to vector<8x256xf32>
    %28 = arith.mulf %25, %27 : vector<8x256xf32>
    %c0_21 = arith.constant 0 : index
    %c0_22 = arith.constant 0 : index
    %29 = vector.load %arg9[%c0_21, %c0_22] : memref<8x1xf32, #tpu.memory_space<vmem>>, vector<8x1xf32>
    %30 = vector.broadcast %29 : vector<8x1xf32> to vector<8x256xf32>
    %31 = arith.addf %28, %30 : vector<8x256xf32>
    %cst_23 = arith.constant 0.000000e+00 : f32
    %32 = vector.broadcast %cst_23 : f32 to vector<8x512xf32>
    %c0_24 = arith.constant 0 : index
    %c0_25 = arith.constant 0 : index
    %33 = vector.load %arg13[%c0_24, %c0_25] : memref<8x512xf32, #tpu.memory_space<vmem>>, vector<8x512xf32>
    tpu.vector_store %arg13[%c0_24, %c0_25], %32 {strides = array<i32>} : memref<8x512xf32, #tpu.memory_space<vmem>>, vector<8x512xf32>,
    %34 = vector.extract_strided_slice %31 {offsets = [0, 0], sizes = [8, 16], strides = [1, 1]} : vector<8x256xf32> to vector<8x16xf32>
    %c0_26 = arith.constant 0 : index
    %c19 = arith.constant 19 : index
    %35 = vector.load %arg13[%c0_26, %c19] : memref<8x512xf32, #tpu.memory_space<vmem>>, vector<8x16xf32>
    tpu.vector_store %arg13[%c0_26, %c19], %34 {strides = array<i32>} : memref<8x512xf32, #tpu.memory_space<vmem>>, vector<8x16xf32>,
    %36 = vector.extract_strided_slice %31 {offsets = [0, 16], sizes = [8, 16], strides = [1, 1]} : vector<8x256xf32> to vector<8x16xf32>
    %c0_27 = arith.constant 0 : index
    %c37 = arith.constant 37 : index
    %37 = vector.load %arg13[%c0_27, %c37] : memref<8x512xf32, #tpu.memory_space<vmem>>, vector<8x16xf32>
    tpu.vector_store %arg13[%c0_27, %c37], %36 {strides = array<i32>} : memref<8x512xf32, #tpu.memory_space<vmem>>, vector<8x16xf32>,
    %38 = vector.extract_strided_slice %31 {offsets = [0, 32], sizes = [8, 16], strides = [1, 1]} : vector<8x256xf32> to vector<8x16xf32>
    %c0_28 = arith.constant 0 : index
    %c55 = arith.constant 55 : index
    %39 = vector.load %arg13[%c0_28, %c55] : memref<8x512xf32, #tpu.memory_space<vmem>>, vector<8x16xf32>
    tpu.vector_store %arg13[%c0_28, %c55], %38 {strides = array<i32>} : memref<8x512xf32, #tpu.memory_space<vmem>>, vector<8x16xf32>,
    %40 = vector.extract_strided_slice %31 {offsets = [0, 48], sizes = [8, 16], strides = [1, 1]} : vector<8x256xf32> to vector<8x16xf32>
    %c0_29 = arith.constant 0 : index
    %c73 = arith.constant 73 : index
    %41 = vector.load %arg13[%c0_29, %c73] : memref<8x512xf32, #tpu.memory_space<vmem>>, vector<8x16xf32>
    tpu.vector_store %arg13[%c0_29, %c73], %40 {strides = array<i32>} : memref<8x512xf32, #tpu.memory_space<vmem>>, vector<8x16xf32>,
    %42 = vector.extract_strided_slice %31 {offsets = [0, 64], sizes = [8, 16], strides = [1, 1]} : vector<8x256xf32> to vector<8x16xf32>
    %c0_30 = arith.constant 0 : index
    %c91 = arith.constant 91 : index
    %43 = vector.load %arg13[%c0_30, %c91] : memref<8x512xf32, #tpu.memory_space<vmem>>, vector<8x16xf32>
    tpu.vector_store %arg13[%c0_30, %c91], %42 {strides = array<i32>} : memref<8x512xf32, #tpu.memory_space<vmem>>, vector<8x16xf32>,
    %44 = vector.extract_strided_slice %31 {offsets = [0, 80], sizes = [8, 16], strides = [1, 1]} : vector<8x256xf32> to vector<8x16xf32>
    %c0_31 = arith.constant 0 : index
    %c109 = arith.constant 109 : index
    %45 = vector.load %arg13[%c0_31, %c109] : memref<8x512xf32, #tpu.memory_space<vmem>>, vector<8x16xf32>
    tpu.vector_store %arg13[%c0_31, %c109], %44 {strides = array<i32>} : memref<8x512xf32, #tpu.memory_space<vmem>>, vector<8x16xf32>,
    %46 = vector.extract_strided_slice %31 {offsets = [0, 96], sizes = [8, 16], strides = [1, 1]} : vector<8x256xf32> to vector<8x16xf32>
    %c0_32 = arith.constant 0 : index
    %c127 = arith.constant 127 : index
    %47 = vector.load %arg13[%c0_32, %c127] : memref<8x512xf32, #tpu.memory_space<vmem>>, vector<8x16xf32>
    tpu.vector_store %arg13[%c0_32, %c127], %46 {strides = array<i32>} : memref<8x512xf32, #tpu.memory_space<vmem>>, vector<8x16xf32>,
    %48 = vector.extract_strided_slice %31 {offsets = [0, 112], sizes = [8, 16], strides = [1, 1]} : vector<8x256xf32> to vector<8x16xf32>
    %c0_33 = arith.constant 0 : index
    %c145 = arith.constant 145 : index
    %49 = vector.load %arg13[%c0_33, %c145] : memref<8x512xf32, #tpu.memory_space<vmem>>, vector<8x16xf32>
    tpu.vector_store %arg13[%c0_33, %c145], %48 {strides = array<i32>} : memref<8x512xf32, #tpu.memory_space<vmem>>, vector<8x16xf32>,
    %50 = vector.extract_strided_slice %31 {offsets = [0, 128], sizes = [8, 16], strides = [1, 1]} : vector<8x256xf32> to vector<8x16xf32>
    %c0_34 = arith.constant 0 : index
    %c163 = arith.constant 163 : index
    %51 = vector.load %arg13[%c0_34, %c163] : memref<8x512xf32, #tpu.memory_space<vmem>>, vector<8x16xf32>
    tpu.vector_store %arg13[%c0_34, %c163], %50 {strides = array<i32>} : memref<8x512xf32, #tpu.memory_space<vmem>>, vector<8x16xf32>,
    %52 = vector.extract_strided_slice %31 {offsets = [0, 144], sizes = [8, 16], strides = [1, 1]} : vector<8x256xf32> to vector<8x16xf32>
    %c0_35 = arith.constant 0 : index
    %c181 = arith.constant 181 : index
    %53 = vector.load %arg13[%c0_35, %c181] : memref<8x512xf32, #tpu.memory_space<vmem>>, vector<8x16xf32>
    tpu.vector_store %arg13[%c0_35, %c181], %52 {strides = array<i32>} : memref<8x512xf32, #tpu.memory_space<vmem>>, vector<8x16xf32>,
    %54 = vector.extract_strided_slice %31 {offsets = [0, 160], sizes = [8, 16], strides = [1, 1]} : vector<8x256xf32> to vector<8x16xf32>
    %c0_36 = arith.constant 0 : index
    %c199 = arith.constant 199 : index
    %55 = vector.load %arg13[%c0_36, %c199] : memref<8x512xf32, #tpu.memory_space<vmem>>, vector<8x16xf32>
    tpu.vector_store %arg13[%c0_36, %c199], %54 {strides = array<i32>} : memref<8x512xf32, #tpu.memory_space<vmem>>, vector<8x16xf32>,
    %56 = vector.extract_strided_slice %31 {offsets = [0, 176], sizes = [8, 16], strides = [1, 1]} : vector<8x256xf32> to vector<8x16xf32>
    %c0_37 = arith.constant 0 : index
    %c217 = arith.constant 217 : index
    %57 = vector.load %arg13[%c0_37, %c217] : memref<8x512xf32, #tpu.memory_space<vmem>>, vector<8x16xf32>
    tpu.vector_store %arg13[%c0_37, %c217], %56 {strides = array<i32>} : memref<8x512xf32, #tpu.memory_space<vmem>>, vector<8x16xf32>,
    %58 = vector.extract_strided_slice %31 {offsets = [0, 192], sizes = [8, 16], strides = [1, 1]} : vector<8x256xf32> to vector<8x16xf32>
    %c0_38 = arith.constant 0 : index
    %c235 = arith.constant 235 : index
    %59 = vector.load %arg13[%c0_38, %c235] : memref<8x512xf32, #tpu.memory_space<vmem>>, vector<8x16xf32>
    tpu.vector_store %arg13[%c0_38, %c235], %58 {strides = array<i32>} : memref<8x512xf32, #tpu.memory_space<vmem>>, vector<8x16xf32>,
    %60 = vector.extract_strided_slice %31 {offsets = [0, 208], sizes = [8, 16], strides = [1, 1]} : vector<8x256xf32> to vector<8x16xf32>
    %c0_39 = arith.constant 0 : index
    %c253 = arith.constant 253 : index
    %61 = vector.load %arg13[%c0_39, %c253] : memref<8x512xf32, #tpu.memory_space<vmem>>, vector<8x16xf32>
    tpu.vector_store %arg13[%c0_39, %c253], %60 {strides = array<i32>} : memref<8x512xf32, #tpu.memory_space<vmem>>, vector<8x16xf32>,
    %62 = vector.extract_strided_slice %31 {offsets = [0, 224], sizes = [8, 16], strides = [1, 1]} : vector<8x256xf32> to vector<8x16xf32>
    %c0_40 = arith.constant 0 : index
    %c271 = arith.constant 271 : index
    %63 = vector.load %arg13[%c0_40, %c271] : memref<8x512xf32, #tpu.memory_space<vmem>>, vector<8x16xf32>
    tpu.vector_store %arg13[%c0_40, %c271], %62 {strides = array<i32>} : memref<8x512xf32, #tpu.memory_space<vmem>>, vector<8x16xf32>,
    %64 = vector.extract_strided_slice %31 {offsets = [0, 240], sizes = [8, 16], strides = [1, 1]} : vector<8x256xf32> to vector<8x16xf32>
    %c0_41 = arith.constant 0 : index
    %c289 = arith.constant 289 : index
    %65 = vector.load %arg13[%c0_41, %c289] : memref<8x512xf32, #tpu.memory_space<vmem>>, vector<8x16xf32>
    tpu.vector_store %arg13[%c0_41, %c289], %64 {strides = array<i32>} : memref<8x512xf32, #tpu.memory_space<vmem>>, vector<8x16xf32>,
    %c0_42 = arith.constant 0 : index
    %c0_43 = arith.constant 0 : index
    %66 = vector.load %arg11[%c0_42, %c0_43] : memref<16x1xf32, #tpu.memory_space<vmem>>, vector<16x1xf32>
    %67 = vector.shape_cast %66 : vector<16x1xf32> to vector<16x1xf32>
    %68 = vector.broadcast %67 : vector<16x1xf32> to vector<16x384xf32>
    %c0_44 = arith.constant 0 : index
    %c0_45 = arith.constant 0 : index
    %69 = vector.load %arg10[%c0_44, %c0_45] : memref<64x8xbf16, #tpu.memory_space<vmem>>, vector<16x8xbf16>
    %c0_46 = arith.constant 0 : index
    %c0_47 = arith.constant 0 : index
    %70 = vector.load %arg13[%c0_46, %c0_47] : memref<8x512xf32, #tpu.memory_space<vmem>>, vector<8x384xf32>
    %71 = arith.truncf %70 : vector<8x384xf32> to vector<8x384xbf16>
    %cst_48 = arith.constant dense<0.000000e+00> : vector<16x384xf32>
    %72 = tpu.matmul %69, %71, %cst_48 {dimension_numbers = #tpu.dot_dimension_numbers<[1], [0], [0], [1], [0, 0, 1, 1], [], []>} : vector<16x8xbf16>, vector<8x384xbf16>, vector<16x384xf32> -> vector<16x384xf32>
    %73 = arith.addf %68, %72 : vector<16x384xf32>
    %c16 = arith.constant 16 : index
    %c0_49 = arith.constant 0 : index
    %74 = vector.load %arg10[%c16, %c0_49] : memref<64x8xbf16, #tpu.memory_space<vmem>>, vector<16x8xbf16>
    %c0_50 = arith.constant 0 : index
    %c1 = arith.constant 1 : index
    %75 = vector.load %arg13[%c0_50, %c1] : memref<8x512xf32, #tpu.memory_space<vmem>>, vector<8x384xf32>
    %76 = arith.truncf %75 : vector<8x384xf32> to vector<8x384xbf16>
    %cst_51 = arith.constant dense<0.000000e+00> : vector<16x384xf32>
    %77 = tpu.matmul %74, %76, %cst_51 {dimension_numbers = #tpu.dot_dimension_numbers<[1], [0], [0], [1], [0, 0, 1, 1], [], []>} : vector<16x8xbf16>, vector<8x384xbf16>, vector<16x384xf32> -> vector<16x384xf32>
    %78 = arith.addf %73, %77 : vector<16x384xf32>
    %c32 = arith.constant 32 : index
    %c0_52 = arith.constant 0 : index
    %79 = vector.load %arg10[%c32, %c0_52] : memref<64x8xbf16, #tpu.memory_space<vmem>>, vector<16x8xbf16>
    %c0_53 = arith.constant 0 : index
    %c18 = arith.constant 18 : index
    %80 = vector.load %arg13[%c0_53, %c18] : memref<8x512xf32, #tpu.memory_space<vmem>>, vector<8x384xf32>
    %81 = arith.truncf %80 : vector<8x384xf32> to vector<8x384xbf16>
    %cst_54 = arith.constant dense<0.000000e+00> : vector<16x384xf32>
    %82 = tpu.matmul %79, %81, %cst_54 {dimension_numbers = #tpu.dot_dimension_numbers<[1], [0], [0], [1], [0, 0, 1, 1], [], []>} : vector<16x8xbf16>, vector<8x384xbf16>, vector<16x384xf32> -> vector<16x384xf32>
    %83 = arith.addf %78, %82 : vector<16x384xf32>
    %c48 = arith.constant 48 : index
    %c0_55 = arith.constant 0 : index
    %84 = vector.load %arg10[%c48, %c0_55] : memref<64x8xbf16, #tpu.memory_space<vmem>>, vector<16x8xbf16>
    %c0_56 = arith.constant 0 : index
    %c19_57 = arith.constant 19 : index
    %85 = vector.load %arg13[%c0_56, %c19_57] : memref<8x512xf32, #tpu.memory_space<vmem>>, vector<8x384xf32>
    %86 = arith.truncf %85 : vector<8x384xf32> to vector<8x384xbf16>
    %cst_58 = arith.constant dense<0.000000e+00> : vector<16x384xf32>
    %87 = tpu.matmul %84, %86, %cst_58 {dimension_numbers = #tpu.dot_dimension_numbers<[1], [0], [0], [1], [0, 0, 1, 1], [], []>} : vector<16x8xbf16>, vector<8x384xbf16>, vector<16x384xf32> -> vector<16x384xf32>
    %88 = arith.addf %83, %87 : vector<16x384xf32>
    %cst_59 = arith.constant 0.000000e+00 : f32
    %89 = vector.broadcast %cst_59 : f32 to vector<16x384xf32>
    %90 = arith.maximumf %88, %89 : vector<16x384xf32>
    %c0_60 = arith.constant 0 : index
    %c0_61 = arith.constant 0 : index
    %c0_62 = arith.constant 0 : index
    %91 = vector.load %arg12[%c0_60, %c0_61, %c0_62] : memref<1x16x384xf32, #tpu.memory_space<vmem>>, vector<1x16x384xf32>
    %92 = vector.shape_cast %91 : vector<1x16x384xf32> to vector<16x384xf32>
    %93 = vector.shape_cast %90 : vector<16x384xf32> to vector<1x16x384xf32>
    tpu.vector_store %arg12[%c0_60, %c0_61, %c0_62], %93 {strides = array<i32>} : memref<1x16x384xf32, #tpu.memory_space<vmem>>, vector<1x16x384xf32>,
    return
  }
  func.func @transform_0(%arg0: i32) -> (i32, i32, i32) {
    %c0_i32 = arith.constant 0 : i32
    %c0_i32_0 = arith.constant 0 : i32
    %c0_i32_1 = arith.constant 0 : i32
    return %arg0, %c0_i32, %c0_i32_0 : i32, i32, i32
  }
  func.func @transform_1(%arg0: i32) -> (i32, i32) {
    %c0_i32 = arith.constant 0 : i32
    %c0_i32_0 = arith.constant 0 : i32
    %c0_i32_1 = arith.constant 0 : i32
    return %c0_i32, %c0_i32_0 : i32, i32
  }
  func.func @transform_2(%arg0: i32) -> (i32, i32) {
    %c0_i32 = arith.constant 0 : i32
    %c0_i32_0 = arith.constant 0 : i32
    %c0_i32_1 = arith.constant 0 : i32
    return %c0_i32, %c0_i32_0 : i32, i32
  }
  func.func @transform_3(%arg0: i32) -> (i32, i32) {
    %c0_i32 = arith.constant 0 : i32
    %c0_i32_0 = arith.constant 0 : i32
    %c0_i32_1 = arith.constant 0 : i32
    return %c0_i32, %c0_i32_0 : i32, i32
  }
  func.func @transform_4(%arg0: i32) -> (i32, i32) {
    %c0_i32 = arith.constant 0 : i32
    %c0_i32_0 = arith.constant 0 : i32
    %c0_i32_1 = arith.constant 0 : i32
    return %c0_i32, %c0_i32_0 : i32, i32
  }
  func.func @transform_5(%arg0: i32) -> (i32, i32) {
    %c0_i32 = arith.constant 0 : i32
    %c0_i32_0 = arith.constant 0 : i32
    %c0_i32_1 = arith.constant 0 : i32
    return %c0_i32, %c0_i32_0 : i32, i32
  }
  func.func @transform_6(%arg0: i32) -> (i32, i32) {
    %c0_i32 = arith.constant 0 : i32
    %c0_i32_0 = arith.constant 0 : i32
    %c0_i32_1 = arith.constant 0 : i32
    return %c0_i32, %c0_i32_0 : i32, i32
  }
  func.func @transform_7(%arg0: i32) -> (i32, i32) {
    %c0_i32 = arith.constant 0 : i32
    %c0_i32_0 = arith.constant 0 : i32
    %c0_i32_1 = arith.constant 0 : i32
    return %c0_i32, %c0_i32_0 : i32, i32
  }
  func.func @transform_8(%arg0: i32) -> (i32, i32) {
    %c0_i32 = arith.constant 0 : i32
    %c0_i32_0 = arith.constant 0 : i32
    %c0_i32_1 = arith.constant 0 : i32
    return %c0_i32, %c0_i32_0 : i32, i32
  }
  func.func @transform_9(%arg0: i32) -> (i32, i32) {
    %c0_i32 = arith.constant 0 : i32
    %c0_i32_0 = arith.constant 0 : i32
    %c0_i32_1 = arith.constant 0 : i32
    return %c0_i32, %c0_i32_0 : i32, i32
  }
  func.func @transform_10(%arg0: i32) -> (i32, i32) {
    %c0_i32 = arith.constant 0 : i32
    %c0_i32_0 = arith.constant 0 : i32
    %c0_i32_1 = arith.constant 0 : i32
    return %c0_i32, %c0_i32_0 : i32, i32
  }
  func.func @transform_11(%arg0: i32) -> (i32, i32, i32) {
    %c0_i32 = arith.constant 0 : i32
    %c0_i32_0 = arith.constant 0 : i32
    %c0_i32_1 = arith.constant 0 : i32
    return %arg0, %c0_i32, %c0_i32_0 : i32, i32, i32
  }
}

</mosaic_0001>

<llo_original>
// kernel: tile.8
$region0: #{tile.8}
  #allocation2 [shape = 's32[1]{0}', space=sflag, size = 0x4, scoped, tag = 'scoped memory for tile.8']
  %s0 = inlined_call_operand.hbm [shape: f32[3], index: 0, kind: input, shape index: {}]
  %s1 = inlined_call_operand.vmem [shape: f32[4,3], index: 1, kind: output, shape index: {}]
  $region1: #{tile.8} parent=0
    #allocation0 [shape = 'u8[512]{0}', space=vmem, size = 0x400, scoped, tag = 'operand span for operand 0']
    #allocation1 [shape = 's32[1]{0}', space=sflag, size = 0x4, scoped, tag = 'scoped memory for tile.8']
    %2 = vsyncpa [#allocation1], 0
    // Predicated region
    $region2: #{tile.8} parent=1 // pred_check
      _
    $region3: #{tile.8} parent=1 // pred_check_branch
      %4 = sbr.rel (0) target = $region5
    $region4: #{tile.8} parent=1 // pred_region
      %s6 = ssub.s32 16, 16
      %7 = vsyncadd [#allocation1], %s6
      %s9 = sshll.u32 [#allocation0], 4
      %s10 = int_to_ptr.vmem [resolvable:$true] %s9
      %12 = dma.hbm_to_vmem [thread:$0]  %s0, 16, %s10, [#allocation1]
    $region5: #{tile.8} parent=1 // pred_fallthru
      _
    // Predicated region
    $region6: #{tile.8} parent=1 // pred_check
      _
    $region7: #{tile.8} parent=1 // pred_check_branch
      %14 = sbr.rel (0) target = $region9
    $region8: #{tile.8} parent=1 // pred_region
      %15 = dma.done [#allocation1], 16
    $region9: #{tile.8} parent=1 // pred_fallthru
      _
    %v16 = vld [vmem:[#allocation0] ss:$0 sm:$0xff]
    %17 = vst [vmem:[%s1] sm:$0xf] %v16
    %18 = vsyncpa [#allocation1], 1

// kernel: tile.9
$region0: #{tile.9}
  %s0 = inlined_call_operand.vmem [shape: f32[4,3], index: 0, kind: input, shape index: {}]
  %s1 = inlined_call_operand.vmem [shape: f32[12], index: 1, kind: output, shape index: {}]
  $region1: #{tile.9} parent=0
    #allocation0 [shape = 'u8[4096]{0}', space=vmem, size = 0x1000, scoped, tag = 'scoped mem for output reshape']
    #allocation1 [shape = 'u8[4096]{0}', space=vmem, size = 0x1000, scoped, tag = 'scoped mem for input reshape']
    %s3 = sshllo.u32 0, 4
    %v4 = vld [vmem:[%s0] sm:%s3]
    %5 = vst [vmem:[#allocation1] sm:%s3] %v4
    %v6 = vld [vmem:[#allocation1] sm:$0x1]
    %vm7 = vcmask 23552
    %8 = vst.msk [vmem:[#allocation0] sm:$0x1] %vm7, %v6
    %s9 = scalar_lea.vmem [#allocation1], 3
    %v10 = vld [vmem:[%s9] sm:$0x1]
    %11 = vrot.lane.b32.xlu0 %v10, 9
    %v12 = vpop.permute.xlu0 %11
    %vm13 = vcmask 97352
    %14 = vst.msk [vmem:[#allocation0] sm:$0x1] %vm13, %v12
    %s15 = scalar_lea.vmem [#allocation1], 2
    %v16 = vld [vmem:[%s15] sm:$0x1]
    %17 = vrot.lane.b32.xlu0 %v16, 6
    %v18 = vpop.permute.xlu0 %17
    %vm19 = vcmask 72752
    %20 = vst.msk [vmem:[#allocation0] sm:$0x1] %vm19, %v18
    %s21 = scalar_lea.vmem [#allocation1], 1
    %v22 = vld [vmem:[%s21] sm:$0x1]
    %23 = vrot.lane.b32.xlu0 %v22, 3
    %v24 = vpop.permute.xlu0 %23
    %vm25 = vcmask 48152
    %26 = vst.msk [vmem:[#allocation0] sm:$0x1] %vm25, %v24
    %s28 = sshllo.u32 0, 1
    %v30 = vld [vmem:[#allocation0] sm:%s28]
    %s31 = sshllo.u32 0, 1
    %32 = vst [vmem:[%s1] sm:%s31] %v30

// kernel: conv_decoder_forward.1
$region0: #{conv_decoder_forward.1}
  #allocation0 [shape = 'u32[]', space=smem, size = 0x4, offset = 0x4, fixed_abs, tag = 'smem constant byte address 0x4 - core index']
  #allocation1 [shape = 'u32[144,128]{1,0:T(1,128)}', space=vmem, size = 0x12000, scoped, tag = 'internal scratch']
  #allocation2 [shape = 'f32[8,512]{1,0:T(8,128)}', space=vmem, size = 0x4000, scoped, tag = 'scratch operand']
  %s0 = inlined_call_operand.vmem [shape: f32[2,32,256], index: 0, kind: input, shape index: {}]
  %s1 = inlined_call_operand.vmem [shape: bf16[32,32], index: 1, kind: input, shape index: {}]
  %s2 = inlined_call_operand.vmem [shape: f32[32,1], index: 2, kind: input, shape index: {}]
  %s3 = inlined_call_operand.vmem [shape: bf16[32,32], index: 3, kind: input, shape index: {}]
  %s4 = inlined_call_operand.vmem [shape: f32[32,1], index: 4, kind: input, shape index: {}]
  %s5 = inlined_call_operand.vmem [shape: bf16[8,32], index: 5, kind: input, shape index: {}]
  %s6 = inlined_call_operand.vmem [shape: f32[8,1], index: 6, kind: input, shape index: {}]
  %s7 = inlined_call_operand.vmem [shape: f32[8,1], index: 7, kind: input, shape index: {}]
  %s8 = inlined_call_operand.vmem [shape: f32[8,1], index: 8, kind: input, shape index: {}]
  %s9 = inlined_call_operand.vmem [shape: bf16[64,8], index: 9, kind: input, shape index: {}]
  %s10 = inlined_call_operand.vmem [shape: f32[16,1], index: 10, kind: input, shape index: {}]
  %s11 = inlined_call_operand.vmem [shape: f32[2,16,384], index: 11, kind: output, shape index: {}]
  %s12 = sld [smem:[#allocation0]]
  $region77: #{conv_decoder_forward.1} parent=0
    _
  %s14 = ssub.s32 1, %s12
  %s15 = scalar_select 0, %s14, %s12
  loop: start=0, step=1, limit=4
  $region2: #{conv_decoder_forward.1} parent=0 // loop_pre_header
    _
  $region3: #{conv_decoder_forward.1} parent=0 // loop_header
    %s17 = sphi 0, %s21
    %p18 = scmp.ge.s32.totalorder %s17, 4
    %s27 = sphi 0, %s29
    %s30 = sphi 0, %s27
    %s31 = sphi 0, %s30
    %s47 = sphi 0, %s31
    %s51 = sphi 0, %s51
    %s53 = sphi 0, %s51
    %s54 = sphi 0, %s53
    %s68 = sphi 0, %s54
    %s72 = sphi 0, %s72
    %s74 = sphi 0, %s72
    %s75 = sphi 0, %s74
    %s89 = sphi 0, %s75
    %s93 = sphi 0, %s93
    %s95 = sphi 0, %s93
    %s96 = sphi 0, %s95
    %s110 = sphi 0, %s96
    %s114 = sphi 0, %s114
    %s116 = sphi 0, %s114
    %s117 = sphi 0, %s116
    %s131 = sphi 0, %s117
    %s135 = sphi 0, %s135
    %s137 = sphi 0, %s135
    %s138 = sphi 0, %s137
    %s152 = sphi 0, %s138
    %s156 = sphi 0, %s156
    %s158 = sphi 0, %s156
    %s159 = sphi 0, %s158
    %s173 = sphi 0, %s159
    %s177 = sphi 0, %s177
    %s179 = sphi 0, %s177
    %s180 = sphi 0, %s179
    %s194 = sphi 0, %s180
    %s198 = sphi 0, %s198
    %s200 = sphi 0, %s198
    %s201 = sphi 0, %s200
    %s215 = sphi 0, %s201
    %s219 = sphi 0, %s219
    %s221 = sphi 0, %s219
    %s222 = sphi 0, %s221
    %s236 = sphi 0, %s222
    %s240 = sphi 0, %s240
    %s242 = sphi 0, %s240
    %s243 = sphi 0, %s242
    %s257 = sphi 0, %s243
    %s263 = sphi 0, %s265
    %s266 = sphi 0, %s263
    %s267 = sphi 0, %s266
    %s283 = sphi 0, %s267
  $region4: #{conv_decoder_forward.1} parent=0 // loop_header_branch
    %20 = sbr.rel (%p18) target = $region8
  $region5: #{conv_decoder_forward.1} parent=0 // loop_body
    %s22 = ssub.s32 %s17, 1
    %s23 = ssub.s32 %s17, 2
    %s24 = sadd.s32 %s17, 1
    %s25 = ssub.s32 %s17, %s24
    %p26 = scmp.eq.s32.totalorder %s25, 0
    %s28 = sadd.s32 %s27, 1
    %s29 = scalar_select %p26, %s27, %s28
    %p32 = pneg %p26
    %p33 = scmp.eq.s32.totalorder %s17, 1
    %p34 = por %p32, %p33
    %p35 = scmp.ne.s32.totalorder %s27, %s30
    %p36 = scmp.eq.s32.totalorder %s17, 0
    %p37 = por %p35, %p36
    %p38 = scmp.ne.s32.totalorder %s27, %s30
    %p39 = scmp.eq.s32.totalorder %s22, 1
    %p40 = por %p38, %p39
    %p41 = scmp.ne.s32.totalorder %s30, %s31
    %p42 = scmp.eq.s32.totalorder %s22, 0
    %p43 = por %p41, %p42
    %p44 = scmp.ne.s32.totalorder %s30, %s31
    %p45 = scmp.eq.s32.totalorder %s23, 1
    %p46 = por %p44, %p45
    %p48 = scmp.ne.s32.totalorder %s31, %s47
    %p49 = scmp.eq.s32.totalorder %s23, 0
    %p50 = por %p48, %p49
    %s52 = sadd.s32 %s51, 1
    %p55 = scmp.eq.s32.totalorder %s17, 1
    %p56 = scmp.ne.s32.totalorder %s51, %s53
    %p57 = scmp.eq.s32.totalorder %s17, 0
    %p58 = por %p56, %p57
    %p59 = scmp.ne.s32.totalorder %s51, %s53
    %p60 = scmp.eq.s32.totalorder %s22, 1
    %p61 = por %p59, %p60
    %p62 = scmp.ne.s32.totalorder %s53, %s54
    %p63 = scmp.eq.s32.totalorder %s22, 0
    %p64 = por %p62, %p63
    %p65 = scmp.ne.s32.totalorder %s53, %s54
    %p66 = scmp.eq.s32.totalorder %s23, 1
    %p67 = por %p65, %p66
    %p69 = scmp.ne.s32.totalorder %s54, %s68
    %p70 = scmp.eq.s32.totalorder %s23, 0
    %p71 = por %p69, %p70
    %s73 = sadd.s32 %s72, 1
    %p76 = scmp.eq.s32.totalorder %s17, 1
    %p77 = scmp.ne.s32.totalorder %s72, %s74
    %p78 = scmp.eq.s32.totalorder %s17, 0
    %p79 = por %p77, %p78
    %p80 = scmp.ne.s32.totalorder %s72, %s74
    %p81 = scmp.eq.s32.totalorder %s22, 1
    %p82 = por %p80, %p81
    %p83 = scmp.ne.s32.totalorder %s74, %s75
    %p84 = scmp.eq.s32.totalorder %s22, 0
    %p85 = por %p83, %p84
    %p86 = scmp.ne.s32.totalorder %s74, %s75
    %p87 = scmp.eq.s32.totalorder %s23, 1
    %p88 = por %p86, %p87
    %p90 = scmp.ne.s32.totalorder %s75, %s89
    %p91 = scmp.eq.s32.totalorder %s23, 0
    %p92 = por %p90, %p91
    %s94 = sadd.s32 %s93, 1
    %p97 = scmp.eq.s32.totalorder %s17, 1
    %p98 = scmp.ne.s32.totalorder %s93, %s95
    %p99 = scmp.eq.s32.totalorder %s17, 0
    %p100 = por %p98, %p99
    %p101 = scmp.ne.s32.totalorder %s93, %s95
    %p102 = scmp.eq.s32.totalorder %s22, 1
    %p103 = por %p101, %p102
    %p104 = scmp.ne.s32.totalorder %s95, %s96
    %p105 = scmp.eq.s32.totalorder %s22, 0
    %p106 = por %p104, %p105
    %p107 = scmp.ne.s32.totalorder %s95, %s96
    %p108 = scmp.eq.s32.totalorder %s23, 1
    %p109 = por %p107, %p108
    %p111 = scmp.ne.s32.totalorder %s96, %s110
    %p112 = scmp.eq.s32.totalorder %s23, 0
    %p113 = por %p111, %p112
    %s115 = sadd.s32 %s114, 1
    %p118 = scmp.eq.s32.totalorder %s17, 1
    %p119 = scmp.ne.s32.totalorder %s114, %s116
    %p120 = scmp.eq.s32.totalorder %s17, 0
    %p121 = por %p119, %p120
    %p122 = scmp.ne.s32.totalorder %s114, %s116
    %p123 = scmp.eq.s32.totalorder %s22, 1
    %p124 = por %p122, %p123
    %p125 = scmp.ne.s32.totalorder %s116, %s117
    %p126 = scmp.eq.s32.totalorder %s22, 0
    %p127 = por %p125, %p126
    %p128 = scmp.ne.s32.totalorder %s116, %s117
    %p129 = scmp.eq.s32.totalorder %s23, 1
    %p130 = por %p128, %p129
    %p132 = scmp.ne.s32.totalorder %s117, %s131
    %p133 = scmp.eq.s32.totalorder %s23, 0
    %p134 = por %p132, %p133
    %s136 = sadd.s32 %s135, 1
    %p139 = scmp.eq.s32.totalorder %s17, 1
    %p140 = scmp.ne.s32.totalorder %s135, %s137
    %p141 = scmp.eq.s32.totalorder %s17, 0
    %p142 = por %p140, %p141
    %p143 = scmp.ne.s32.totalorder %s135, %s137
    %p144 = scmp.eq.s32.totalorder %s22, 1
    %p145 = por %p143, %p144
    %p146 = scmp.ne.s32.totalorder %s137, %s138
    %p147 = scmp.eq.s32.totalorder %s22, 0
    %p148 = por %p146, %p147
    %p149 = scmp.ne.s32.totalorder %s137, %s138
    %p150 = scmp.eq.s32.totalorder %s23, 1
    %p151 = por %p149, %p150
    %p153 = scmp.ne.s32.totalorder %s138, %s152
    %p154 = scmp.eq.s32.totalorder %s23, 0
    %p155 = por %p153, %p154
    %s157 = sadd.s32 %s156, 1
    %p160 = scmp.eq.s32.totalorder %s17, 1
    %p161 = scmp.ne.s32.totalorder %s156, %s158
    %p162 = scmp.eq.s32.totalorder %s17, 0
    %p163 = por %p161, %p162
    %p164 = scmp.ne.s32.totalorder %s156, %s158
    %p165 = scmp.eq.s32.totalorder %s22, 1
    %p166 = por %p164, %p165
    %p167 = scmp.ne.s32.totalorder %s158, %s159
    %p168 = scmp.eq.s32.totalorder %s22, 0
    %p169 = por %p167, %p168
    %p170 = scmp.ne.s32.totalorder %s158, %s159
    %p171 = scmp.eq.s32.totalorder %s23, 1
    %p172 = por %p170, %p171
    %p174 = scmp.ne.s32.totalorder %s159, %s173
    %p175 = scmp.eq.s32.totalorder %s23, 0
    %p176 = por %p174, %p175
    %s178 = sadd.s32 %s177, 1
    %p181 = scmp.eq.s32.totalorder %s17, 1
    %p182 = scmp.ne.s32.totalorder %s177, %s179
    %p183 = scmp.eq.s32.totalorder %s17, 0
    %p184 = por %p182, %p183
    %p185 = scmp.ne.s32.totalorder %s177, %s179
    %p186 = scmp.eq.s32.totalorder %s22, 1
    %p187 = por %p185, %p186
    %p188 = scmp.ne.s32.totalorder %s179, %s180
    %p189 = scmp.eq.s32.totalorder %s22, 0
    %p190 = por %p188, %p189
    %p191 = scmp.ne.s32.totalorder %s179, %s180
    %p192 = scmp.eq.s32.totalorder %s23, 1
    %p193 = por %p191, %p192
    %p195 = scmp.ne.s32.totalorder %s180, %s194
    %p196 = scmp.eq.s32.totalorder %s23, 0
    %p197 = por %p195, %p196
    %s199 = sadd.s32 %s198, 1
    %p202 = scmp.eq.s32.totalorder %s17, 1
    %p203 = scmp.ne.s32.totalorder %s198, %s200
    %p204 = scmp.eq.s32.totalorder %s17, 0
    %p205 = por %p203, %p204
    %p206 = scmp.ne.s32.totalorder %s198, %s200
    %p207 = scmp.eq.s32.totalorder %s22, 1
    %p208 = por %p206, %p207
    %p209 = scmp.ne.s32.totalorder %s200, %s201
    %p210 = scmp.eq.s32.totalorder %s22, 0
    %p211 = por %p209, %p210
    %p212 = scmp.ne.s32.totalorder %s200, %s201
    %p213 = scmp.eq.s32.totalorder %s23, 1
    %p214 = por %p212, %p213
    %p216 = scmp.ne.s32.totalorder %s201, %s215
    %p217 = scmp.eq.s32.totalorder %s23, 0
    %p218 = por %p216, %p217
    %s220 = sadd.s32 %s219, 1
    %p223 = scmp.eq.s32.totalorder %s17, 1
    %p224 = scmp.ne.s32.totalorder %s219, %s221
    %p225 = scmp.eq.s32.totalorder %s17, 0
    %p226 = por %p224, %p225
    %p227 = scmp.ne.s32.totalorder %s219, %s221
    %p228 = scmp.eq.s32.totalorder %s22, 1
    %p229 = por %p227, %p228
    %p230 = scmp.ne.s32.totalorder %s221, %s222
    %p231 = scmp.eq.s32.totalorder %s22, 0
    %p232 = por %p230, %p231
    %p233 = scmp.ne.s32.totalorder %s221, %s222
    %p234 = scmp.eq.s32.totalorder %s23, 1
    %p235 = por %p233, %p234
    %p237 = scmp.ne.s32.totalorder %s222, %s236
    %p238 = scmp.eq.s32.totalorder %s23, 0
    %p239 = por %p237, %p238
    %s241 = sadd.s32 %s240, 1
    %p244 = scmp.eq.s32.totalorder %s17, 1
    %p245 = scmp.ne.s32.totalorder %s240, %s242
    %p246 = scmp.eq.s32.totalorder %s17, 0
    %p247 = por %p245, %p246
    %p248 = scmp.ne.s32.totalorder %s240, %s242
    %p249 = scmp.eq.s32.totalorder %s22, 1
    %p250 = por %p248, %p249
    %p251 = scmp.ne.s32.totalorder %s242, %s243
    %p252 = scmp.eq.s32.totalorder %s22, 0
    %p253 = por %p251, %p252
    %p254 = scmp.ne.s32.totalorder %s242, %s243
    %p255 = scmp.eq.s32.totalorder %s23, 1
    %p256 = por %p254, %p255
    %p258 = scmp.ne.s32.totalorder %s243, %s257
    %p259 = scmp.eq.s32.totalorder %s23, 0
    %p260 = por %p258, %p259
    %s261 = ssub.s32 %s17, %s24
    %p262 = scmp.eq.s32.totalorder %s261, 0
    %s264 = sadd.s32 %s263, 1
    %s265 = scalar_select %p262, %s263, %s264
    %p268 = pneg %p262
    %p269 = scmp.eq.s32.totalorder %s17, 1
    %p270 = por %p268, %p269
    %p271 = scmp.ne.s32.totalorder %s263, %s266
    %p272 = scmp.eq.s32.totalorder %s17, 0
    %p273 = por %p271, %p272
    %p274 = scmp.ne.s32.totalorder %s263, %s266
    %p275 = scmp.eq.s32.totalorder %s22, 1
    %p276 = por %p274, %p275
    %p277 = scmp.ne.s32.totalorder %s266, %s267
    %p278 = scmp.eq.s32.totalorder %s22, 0
    %p279 = por %p277, %p278
    %p280 = scmp.ne.s32.totalorder %s266, %s267
    %p281 = scmp.eq.s32.totalorder %s23, 1
    %p282 = por %p280, %p281
    %p284 = scmp.ne.s32.totalorder %s267, %s283
    %p285 = scmp.eq.s32.totalorder %s23, 0
    %p286 = por %p284, %p285
    %p287 = scmp.le.s32.totalorder 1, %s17
    %p288 = scmp.lt.s32.totalorder %s17, 3
    %p289 = pnand %p287, %p288
    %p290 = pneg %p289
    // Predicated region
    $region9: #{conv_decoder_forward.1} parent=5 // pred_check
      _
    $region10: #{conv_decoder_forward.1} parent=5 // pred_check_branch
      %292 = sbr.rel (%p289) target = $region12
    $region11: #{conv_decoder_forward.1} parent=5 // pred_region
      %s293 = ssub.s32 %s17, 1
      // Predicated region
      $region13: #{conv_decoder_forward.1} parent=11 // pred_check
        %p294 = pneg %p64
      $region14: #{conv_decoder_forward.1} parent=11 // pred_check_branch
        %296 = sbr.rel (%p294) target = $region16
      $region15: #{conv_decoder_forward.1} parent=11 // pred_region
        _
      $region16: #{conv_decoder_forward.1} parent=11 // pred_fallthru
        _
      // Predicated region
      $region17: #{conv_decoder_forward.1} parent=11 // pred_check
        %p297 = pneg %p85
      $region18: #{conv_decoder_forward.1} parent=11 // pred_check_branch
        %299 = sbr.rel (%p297) target = $region20
      $region19: #{conv_decoder_forward.1} parent=11 // pred_region
        _
      $region20: #{conv_decoder_forward.1} parent=11 // pred_fallthru
        _
      // Predicated region
      $region21: #{conv_decoder_forward.1} parent=11 // pred_check
        %p300 = pneg %p106
      $region22: #{conv_decoder_forward.1} parent=11 // pred_check_branch
        %302 = sbr.rel (%p300) target = $region24
      $region23: #{conv_decoder_forward.1} parent=11 // pred_region
        _
      $region24: #{conv_decoder_forward.1} parent=11 // pred_fallthru
        _
      // Predicated region
      $region25: #{conv_decoder_forward.1} parent=11 // pred_check
        %p303 = pneg %p127
      $region26: #{conv_decoder_forward.1} parent=11 // pred_check_branch
        %305 = sbr.rel (%p303) target = $region28
      $region27: #{conv_decoder_forward.1} parent=11 // pred_region
        _
      $region28: #{conv_decoder_forward.1} parent=11 // pred_fallthru
        _
      // Predicated region
      $region29: #{conv_decoder_forward.1} parent=11 // pred_check
        %p306 = pneg %p148
      $region30: #{conv_decoder_forward.1} parent=11 // pred_check_branch
        %308 = sbr.rel (%p306) target = $region32
      $region31: #{conv_decoder_forward.1} parent=11 // pred_region
        _
      $region32: #{conv_decoder_forward.1} parent=11 // pred_fallthru
        _
      // Predicated region
      $region33: #{conv_decoder_forward.1} parent=11 // pred_check
        %p309 = pneg %p169
      $region34: #{conv_decoder_forward.1} parent=11 // pred_check_branch
        %311 = sbr.rel (%p309) target = $region36
      $region35: #{conv_decoder_forward.1} parent=11 // pred_region
        _
      $region36: #{conv_decoder_forward.1} parent=11 // pred_fallthru
        _
      // Predicated region
      $region37: #{conv_decoder_forward.1} parent=11 // pred_check
        %p312 = pneg %p190
      $region38: #{conv_decoder_forward.1} parent=11 // pred_check_branch
        %314 = sbr.rel (%p312) target = $region40
      $region39: #{conv_decoder_forward.1} parent=11 // pred_region
        _
      $region40: #{conv_decoder_forward.1} parent=11 // pred_fallthru
        _
      // Predicated region
      $region41: #{conv_decoder_forward.1} parent=11 // pred_check
        %p315 = pneg %p211
      $region42: #{conv_decoder_forward.1} parent=11 // pred_check_branch
        %317 = sbr.rel (%p315) target = $region44
      $region43: #{conv_decoder_forward.1} parent=11 // pred_region
        _
      $region44: #{conv_decoder_forward.1} parent=11 // pred_fallthru
        _
      // Predicated region
      $region45: #{conv_decoder_forward.1} parent=11 // pred_check
        %p318 = pneg %p232
      $region46: #{conv_decoder_forward.1} parent=11 // pred_check_branch
        %320 = sbr.rel (%p318) target = $region48
      $region47: #{conv_decoder_forward.1} parent=11 // pred_region
        _
      $region48: #{conv_decoder_forward.1} parent=11 // pred_fallthru
        _
      // Predicated region
      $region49: #{conv_decoder_forward.1} parent=11 // pred_check
        %p321 = pneg %p253
      $region50: #{conv_decoder_forward.1} parent=11 // pred_check_branch
        %323 = sbr.rel (%p321) target = $region52
      $region51: #{conv_decoder_forward.1} parent=11 // pred_region
        _
      $region52: #{conv_decoder_forward.1} parent=11 // pred_fallthru
        _
    $region12: #{conv_decoder_forward.1} parent=5 // pred_fallthru
      _
    %p324 = scmp.lt.s32.totalorder %s17, 2
    // Predicated region
    $region53: #{conv_decoder_forward.1} parent=5 // pred_check
      %p325 = pneg %p324
    $region54: #{conv_decoder_forward.1} parent=5 // pred_check_branch
      %327 = sbr.rel (%p325) target = $region56
    $region55: #{conv_decoder_forward.1} parent=5 // pred_region
      // Predicated region
      $region57: #{conv_decoder_forward.1} parent=55 // pred_check
        %p328 = pneg %p37
      $region58: #{conv_decoder_forward.1} parent=55 // pred_check_branch
        %330 = sbr.rel (%p328) target = $region60
      $region59: #{conv_decoder_forward.1} parent=55 // pred_region
        %p331 = scmp.lt.s32.totalorder %s17, 1
        %s332 = scalar_select %p331, %s17, 1
        %s333 = smul.addr %s332, 8
        %s334 = smul.addr %s333, 8
        %s335 = scalar_lea.vmem %s0, %s334
      $region60: #{conv_decoder_forward.1} parent=55 // pred_fallthru
        _
    $region56: #{conv_decoder_forward.1} parent=5 // pred_fallthru
      _
    %p336 = scmp.le.s32.totalorder 1, %s17
    %p337 = scmp.lt.s32.totalorder %s17, 3
    %p338 = pnand %p336, %p337
    %p339 = pneg %p338
    // Predicated region
    $region61: #{conv_decoder_forward.1} parent=5 // pred_check
      _
    $region62: #{conv_decoder_forward.1} parent=5 // pred_check_branch
      %341 = sbr.rel (%p338) target = $region64
    $region63: #{conv_decoder_forward.1} parent=5 // pred_region
      %s342 = ssub.s32 %s17, 1
      %p343 = scmp.lt.s32.totalorder %s22, 1
      %s344 = scalar_select %p343, %s22, 1
      %s345 = smul.addr %s344, 8
      %s346 = smul.addr %s345, 8
      %s347 = scalar_lea.vmem %s0, %s346
      %p348 = pneg %p43
      %p349 = pneg %p40
      %p350 = pneg %p64
      %p351 = pneg %p61
      %p352 = pneg %p85
      %p353 = pneg %p82
      %p354 = pneg %p106
      %p355 = pneg %p103
      %p356 = pneg %p127
      %p357 = pneg %p124
      %p358 = pneg %p148
      %p359 = pneg %p145
      %p360 = pneg %p169
      %p361 = pneg %p166
      %p362 = pneg %p190
      %p363 = pneg %p187
      %p364 = pneg %p211
      %p365 = pneg %p208
      %p366 = pneg %p232
      %p367 = pneg %p229
      %p368 = pneg %p253
      %p369 = pneg %p250
      %p370 = pneg %p279
      %p371 = pneg %p276
      %p372 = scmp.lt.s32.totalorder %s22, 1
      %s373 = scalar_select %p372, %s22, 1
      %s374 = smul.addr %s373, 6
      %s375 = smul.addr %s374, 8
      %s376 = scalar_lea.vmem %s11, %s375
      %p377 = scmp.lt.s32.totalorder %s22, 1
      %s378 = scalar_select %p377, %s22, 1
      %s379 = smul.addr %s378, 8
      %s380 = smul.addr %s379, 8
      %s381 = scalar_lea.vmem %s0, %s380
      %p382 = scmp.lt.s32.totalorder %s22, 1
      %s383 = scalar_select %p382, %s22, 1
      %s384 = smul.addr %s383, 6
      %s385 = smul.addr %s384, 8
      %s386 = scalar_lea.vmem %s11, %s385
      %v388 = vld [vmem:[%s381] sm:$0xff]
      %v389 = vld [vmem:[%s381 + $0x8] sm:$0xff]
      %v390 = vld [vmem:[%s381 + $0x10] sm:$0xff]
      %v391 = vld [vmem:[%s381 + $0x18] sm:$0xff]
      %v392 = vld [vmem:[%s381 + $0x20] sm:$0xff]
      %v393 = vld [vmem:[%s381 + $0x28] sm:$0xff]
      %v394 = vld [vmem:[%s381 + $0x30] sm:$0xff]
      %v395 = vld [vmem:[%s381 + $0x38] sm:$0xff]
      %v396 = vpack.c.bf16 %v390, %v388
      %v397 = vpack.c.bf16 %v391, %v389
      %v398 = vpack.c.bf16 %v394, %v392
      %v399 = vpack.c.bf16 %v395, %v393
      %v400 = vld [vmem:[%s1] sm:$0xf]
      %v401 = vld [vmem:[%s1 + $0x4] sm:$0xf]
      %v402 = vld [vmem:[%s1 + $0x8] sm:$0xf]
      %v403 = vld [vmem:[%s1 + $0xc] sm:$0xf]
      %v404 = vld [vmem:[%s2] sm:$0xff]
      %v405 = vld [vmem:[%s2 + $0x8] sm:$0xff]
      %v406 = vld [vmem:[%s2 + $0x10] sm:$0xff]
      %v407 = vld [vmem:[%s2 + $0x18] sm:$0xff]
      %409 = vset.pattern.permute.xlu0 0
      %410 = vperm.xlu0 %409, %v404
      %v411 = vpop.permute.xlu0 %410
      %414 = vset.pattern.permute.xlu0 0
      %415 = vperm.xlu0 %414, %v405
      %v416 = vpop.permute.xlu0 %415
      %419 = vset.pattern.permute.xlu0 0
      %420 = vperm.xlu0 %419, %v406
      %v421 = vpop.permute.xlu0 %420
      %424 = vset.pattern.permute.xlu0 0
      %425 = vperm.xlu0 %424, %v407
      %v426 = vpop.permute.xlu0 %425
      %v432 = vunpack.c.l.b16 %v400
      %v433 = vunpack.c.l.b16 %v401
      %v434 = vunpack.c.l.b16 %v402
      %v435 = vunpack.c.l.b16 %v403
      %v436 = vpack.c.b16 %v433, %v432
      %v437 = vpack.c.b16 %v435, %v434
      %vm438 = vcmask 261120
      %v440 = vsel %vm438, %v436, 0
      %v443 = vsel %vm438, %v437, 0
      %445 = vmatprep.subr.bf16.mxu0 %v397
      %446 = vmatpush1.bf16.msra.mxu0 %v396
      %447 = vmatprep.subr.bf16.mxu0 %v399
      %448 = vmatpush1.bf16.msra.mxu0 %v398
      %449 = vmatprep.subr.bf16.mxu0 0
      %450 = vmatpush1.bf16.msra.mxu0 0
      %451 = vmatprep.subr.bf16.mxu0 0
      %452 = vmatpush1.bf16.msra.mxu0 0
      %453 = vmatprep.subr.bf16.mxu0 0
      %454 = vmatpush1.bf16.msra.mxu0 0
      %455 = vmatprep.subr.bf16.mxu0 0
      %456 = vmatpush1.bf16.msra.mxu0 0
      %457 = vmatprep.subr.bf16.mxu0 0
      %458 = vmatpush1.bf16.msra.mxu0 0
      %459 = vmatprep.subr.bf16.mxu0 0
      %460 = vmatpush1.bf16.msra.mxu0 0
      %461 = vmatprep.subr.bf16.mxu0 0
      %462 = vmatpush1.bf16.msra.mxu0 0
      %463 = vmatprep.subr.bf16.mxu0 0
      %464 = vmatpush1.bf16.msra.mxu0 0
      %465 = vmatprep.subr.bf16.mxu0 0
      %466 = vmatpush1.bf16.msra.mxu0 0
      %467 = vmatprep.subr.bf16.mxu0 0
      %468 = vmatpush1.bf16.msra.mxu0 0
      %469 = vmatprep.subr.bf16.mxu0 0
      %470 = vmatpush1.bf16.msra.mxu0 0
      %471 = vmatprep.subr.bf16.mxu0 0
      %472 = vmatpush1.bf16.msra.mxu0 0
      %473 = vmatprep.subr.bf16.mxu0 0
      %474 = vmatpush1.bf16.msra.mxu0 0
      %475 = vmatprep.subr.bf16.mxu0 0
      %476 = vmatpush1.bf16.msra.mxu0 0
      %477 = vmatprep.mubr.bf16.mxu0 0
      %478 = vmatmul.mubr.bf16.gmra.mrb[0].mxu0 %v440
      %v479 = vpop.f32.mrb[0].mxu0
      %v480 = vadd.f32 %v411, %v479
      %v481 = vpop.f32.mrb[0].mxu0
      %v482 = vadd.f32 %v411, %v481
      %v483 = vpop.f32.mrb[0].mxu0
      %v484 = vadd.f32 %v416, %v483
      %v485 = vpop.f32.mrb[0].mxu0
      %v486 = vadd.f32 %v416, %v485
      %487 = vmatprep.mubr.bf16.mxu0 0
      %488 = vmatmul.mubr.bf16.gmra.mrb[0].mxu0 %v443
      %v489 = vpop.f32.mrb[0].mxu0
      %v490 = vadd.f32 %v421, %v489
      %v491 = vpop.f32.mrb[0].mxu0
      %v492 = vadd.f32 %v421, %v491
      %v493 = vpop.f32.mrb[0].mxu0
      %v494 = vadd.f32 %v426, %v493
      %v495 = vpop.f32.mrb[0].mxu0
      %v496 = vadd.f32 %v426, %v495
      %497 = vdwg.mxu0
      %v498 = vmax.f32 %v480, 0.0
      %v499 = vmax.f32 %v482, 0.0
      %v500 = vmax.f32 %v484, 0.0
      %v501 = vmax.f32 %v486, 0.0
      %v502 = vmax.f32 %v490, 0.0
      %v503 = vmax.f32 %v492, 0.0
      %v504 = vmax.f32 %v494, 0.0
      %v505 = vmax.f32 %v496, 0.0
      %v506 = vpack.c.bf16 %v500, %v498
      %v507 = vpack.c.bf16 %v501, %v499
      %v508 = vpack.c.bf16 %v504, %v502
      %v509 = vpack.c.bf16 %v505, %v503
      %v510 = vld [vmem:[%s3] sm:$0xf]
      %v511 = vld [vmem:[%s3 + $0x4] sm:$0xf]
      %v512 = vld [vmem:[%s3 + $0x8] sm:$0xf]
      %v513 = vld [vmem:[%s3 + $0xc] sm:$0xf]
      %v514 = vld [vmem:[%s4] sm:$0xff]
      %v515 = vld [vmem:[%s4 + $0x8] sm:$0xff]
      %v516 = vld [vmem:[%s4 + $0x10] sm:$0xff]
      %v517 = vld [vmem:[%s4 + $0x18] sm:$0xff]
      %519 = vset.pattern.permute.xlu0 0
      %520 = vperm.xlu0 %519, %v514
      %v521 = vpop.permute.xlu0 %520
      %524 = vset.pattern.permute.xlu0 0
      %525 = vperm.xlu0 %524, %v515
      %v526 = vpop.permute.xlu0 %525
      %529 = vset.pattern.permute.xlu0 0
      %530 = vperm.xlu0 %529, %v516
      %v531 = vpop.permute.xlu0 %530
      %534 = vset.pattern.permute.xlu0 0
      %535 = vperm.xlu0 %534, %v517
      %v536 = vpop.permute.xlu0 %535
      %v542 = vunpack.c.l.b16 %v510
      %v543 = vunpack.c.l.b16 %v511
      %v544 = vunpack.c.l.b16 %v512
      %v545 = vunpack.c.l.b16 %v513
      %v546 = vpack.c.b16 %v543, %v542
      %v547 = vpack.c.b16 %v545, %v544
      %v549 = vsel %vm438, %v546, 0
      %v552 = vsel %vm438, %v547, 0
      %554 = vmatprep.subr.bf16.mxu0 %v507
      %555 = vmatpush1.bf16.msra.mxu0 %v506
      %556 = vmatprep.subr.bf16.mxu0 %v509
      %557 = vmatpush1.bf16.msra.mxu0 %v508
      %558 = vmatprep.subr.bf16.mxu0 0
      %559 = vmatpush1.bf16.msra.mxu0 0
      %560 = vmatprep.subr.bf16.mxu0 0
      %561 = vmatpush1.bf16.msra.mxu0 0
      %562 = vmatprep.subr.bf16.mxu0 0
      %563 = vmatpush1.bf16.msra.mxu0 0
      %564 = vmatprep.subr.bf16.mxu0 0
      %565 = vmatpush1.bf16.msra.mxu0 0
      %566 = vmatprep.subr.bf16.mxu0 0
      %567 = vmatpush1.bf16.msra.mxu0 0
      %568 = vmatprep.subr.bf16.mxu0 0
      %569 = vmatpush1.bf16.msra.mxu0 0
      %570 = vmatprep.subr.bf16.mxu0 0
      %571 = vmatpush1.bf16.msra.mxu0 0
      %572 = vmatprep.subr.bf16.mxu0 0
      %573 = vmatpush1.bf16.msra.mxu0 0
      %574 = vmatprep.subr.bf16.mxu0 0
      %575 = vmatpush1.bf16.msra.mxu0 0
      %576 = vmatprep.subr.bf16.mxu0 0
      %577 = vmatpush1.bf16.msra.mxu0 0
      %578 = vmatprep.subr.bf16.mxu0 0
      %579 = vmatpush1.bf16.msra.mxu0 0
      %580 = vmatprep.subr.bf16.mxu0 0
      %581 = vmatpush1.bf16.msra.mxu0 0
      %582 = vmatprep.subr.bf16.mxu0 0
      %583 = vmatpush1.bf16.msra.mxu0 0
      %584 = vmatprep.subr.bf16.mxu0 0
      %585 = vmatpush1.bf16.msra.mxu0 0
      %586 = vmatprep.mubr.bf16.mxu0 0
      %587 = vmatmul.mubr.bf16.gmra.mrb[0].mxu0 %v549
      %v588 = vpop.f32.mrb[0].mxu0
      %v589 = vadd.f32 %v521, %v588
      %v590 = vpop.f32.mrb[0].mxu0
      %v591 = vadd.f32 %v521, %v590
      %v592 = vpop.f32.mrb[0].mxu0
      %v593 = vadd.f32 %v526, %v592
      %v594 = vpop.f32.mrb[0].mxu0
      %v595 = vadd.f32 %v526, %v594
      %596 = vmatprep.mubr.bf16.mxu0 0
      %597 = vmatmul.mubr.bf16.gmra.mrb[0].mxu0 %v552
      %v598 = vpop.f32.mrb[0].mxu0
      %v599 = vadd.f32 %v531, %v598
      %v600 = vpop.f32.mrb[0].mxu0
      %v601 = vadd.f32 %v531, %v600
      %v602 = vpop.f32.mrb[0].mxu0
      %v603 = vadd.f32 %v536, %v602
      %v604 = vpop.f32.mrb[0].mxu0
      %v605 = vadd.f32 %v536, %v604
      %606 = vdwg.mxu0
      %v607 = vmax.f32 %v589, 0.0
      %v608 = vmax.f32 %v591, 0.0
      %v609 = vmax.f32 %v593, 0.0
      %v610 = vmax.f32 %v595, 0.0
      %v611 = vmax.f32 %v599, 0.0
      %v612 = vmax.f32 %v601, 0.0
      %v613 = vmax.f32 %v603, 0.0
      %v614 = vmax.f32 %v605, 0.0
      %v615 = vpack.c.bf16 %v609, %v607
      %v616 = vpack.c.bf16 %v610, %v608
      %v617 = vpack.c.bf16 %v613, %v611
      %v618 = vpack.c.bf16 %v614, %v612
      %v619 = vld [vmem:[%s5] sm:$0xf]
      %v620 = vld [vmem:[%s6] sm:$0xff]
      %622 = vset.pattern.permute.xlu0 0
      %623 = vperm.xlu0 %622, %v620
      %v624 = vpop.permute.xlu0 %623
      %v627 = vsel %vm438, %v619, 0
      %629 = vmatprep.subr.bf16.mxu0 %v616
      %630 = vmatpush1.bf16.msra.mxu0 %v615
      %631 = vmatprep.subr.bf16.mxu0 %v618
      %632 = vmatpush1.bf16.msra.mxu0 %v617
      %633 = vmatprep.subr.bf16.mxu0 0
      %634 = vmatpush1.bf16.msra.mxu0 0
      %635 = vmatprep.subr.bf16.mxu0 0
      %636 = vmatpush1.bf16.msra.mxu0 0
      %637 = vmatprep.subr.bf16.mxu0 0
      %638 = vmatpush1.bf16.msra.mxu0 0
      %639 = vmatprep.subr.bf16.mxu0 0
      %640 = vmatpush1.bf16.msra.mxu0 0
      %641 = vmatprep.subr.bf16.mxu0 0
      %642 = vmatpush1.bf16.msra.mxu0 0
      %643 = vmatprep.subr.bf16.mxu0 0
      %644 = vmatpush1.bf16.msra.mxu0 0
      %645 = vmatprep.subr.bf16.mxu0 0
      %646 = vmatpush1.bf16.msra.mxu0 0
      %647 = vmatprep.subr.bf16.mxu0 0
      %648 = vmatpush1.bf16.msra.mxu0 0
      %649 = vmatprep.subr.bf16.mxu0 0
      %650 = vmatpush1.bf16.msra.mxu0 0
      %651 = vmatprep.subr.bf16.mxu0 0
      %652 = vmatpush1.bf16.msra.mxu0 0
      %653 = vmatprep.subr.bf16.mxu0 0
      %654 = vmatpush1.bf16.msra.mxu0 0
      %655 = vmatprep.subr.bf16.mxu0 0
      %656 = vmatpush1.bf16.msra.mxu0 0
      %657 = vmatprep.subr.bf16.mxu0 0
      %658 = vmatpush1.bf16.msra.mxu0 0
      %659 = vmatprep.subr.bf16.mxu0 0
      %660 = vmatpush1.bf16.msra.mxu0 0
      %661 = vmatprep.mubr.bf16.mxu0 0
      %662 = vmatmul.mubr.bf16.gmra.mrb[0].mxu0 %v627
      %v663 = vpop.f32.mrb[0].mxu0
      %v664 = vadd.f32 %v624, %v663
      %v665 = vpop.f32.mrb[0].mxu0
      %v666 = vadd.f32 %v624, %v665
      %v667 = vpop.f32.mrb[0].mxu0
      %v668 = vpop.f32.mrb[0].mxu0
      %669 = vdwg.mxu0
      %v670 = vmax.f32 %v664, 0.0
      %v671 = vmax.f32 %v666, 0.0
      %v672 = vld [vmem:[%s7] sm:$0xff]
      %674 = vset.pattern.permute.xlu0 0
      %675 = vperm.xlu0 %674, %v672
      %v676 = vpop.permute.xlu0 %675
      %v678 = vmul.f32 %v670, %v676
      %v679 = vmul.f32 %v671, %v676
      %v680 = vld [vmem:[%s8] sm:$0xff]
      %682 = vset.pattern.permute.xlu0 0
      %683 = vperm.xlu0 %682, %v680
      %v684 = vpop.permute.xlu0 %683
      %v686 = vadd.f32 %v678, %v684
      %v687 = vadd.f32 %v679, %v684
      %688 = vst [vmem:[#allocation2] sm:$0xff] 0.0
      %689 = vst [vmem:[#allocation2 + $0x8] sm:$0xff] 0.0
      %690 = vst [vmem:[#allocation2 + $0x10] sm:$0xff] 0.0
      %691 = vst [vmem:[#allocation2 + $0x18] sm:$0xff] 0.0
      %693 = vrot.lane.b32.xlu0 %v686, 19
      %v694 = vpop.permute.xlu0 %693
      %vm696 = vcmask 285848
      %697 = vst.msk [vmem:[#allocation2] sm:$0xff] %vm696, %v694
      %698 = vrot.lane.b32.xlu0 %v686, 21
      %v699 = vpop.permute.xlu0 %698
      %vm701 = vcmask 433448
      %702 = vst.msk [vmem:[#allocation2] sm:$0xff] %vm701, %v699
      %703 = vrot.lane.b32.xlu0 %v686, 23
      %v704 = vpop.permute.xlu0 %703
      %vm706 = vcmask 581048
      %707 = vst.msk [vmem:[#allocation2] sm:$0xff] %vm706, %v704
      %708 = vrot.lane.b32.xlu0 %v686, 25
      %v709 = vpop.permute.xlu0 %708
      %vm711 = vcmask 728648
      %712 = vst.msk [vmem:[#allocation2] sm:$0xff] %vm711, %v709
      %713 = vrot.lane.b32.xlu0 %v686, 27
      %v714 = vpop.permute.xlu0 %713
      %vm716 = vcmask 876248
      %717 = vst.msk [vmem:[#allocation2] sm:$0xff] %vm716, %v714
      %718 = vrot.lane.b32.xlu0 %v686, 29
      %v719 = vpop.permute.xlu0 %718
      %vm721 = vcmask 1023848
      %722 = vst.msk [vmem:[#allocation2] sm:$0xff] %vm721, %v719
      %723 = vrot.lane.b32.xlu0 %v686, 31
      %v724 = vpop.permute.xlu0 %723
      %vm726 = vcmask 1048568
      %727 = vst.msk [vmem:[#allocation2] sm:$0xff] %vm726, %v724
      %vm728 = vcmask 121856
      %729 = vst.msk [vmem:[#allocation2 + $0x8] sm:$0xff] %vm728, %v724
      %730 = vrot.lane.b32.xlu0 %v686, 33
      %v731 = vpop.permute.xlu0 %730
      %vm733 = vcmask 269448
      %734 = vst.msk [vmem:[#allocation2 + $0x8] sm:$0xff] %vm733, %v731
      %736 = vrot.lane.b32.xlu0 %v687, 35
      %v737 = vpop.permute.xlu0 %736
      %vm739 = vcmask 417048
      %740 = vst.msk [vmem:[#allocation2 + $0x8] sm:$0xff] %vm739, %v737
      %741 = vrot.lane.b32.xlu0 %v687, 37
      %v742 = vpop.permute.xlu0 %741
      %vm744 = vcmask 564648
      %745 = vst.msk [vmem:[#allocation2 + $0x8] sm:$0xff] %vm744, %v742
      %746 = vrot.lane.b32.xlu0 %v687, 39
      %v747 = vpop.permute.xlu0 %746
      %vm749 = vcmask 712248
      %750 = vst.msk [vmem:[#allocation2 + $0x8] sm:$0xff] %vm749, %v747
      %751 = vrot.lane.b32.xlu0 %v687, 41
      %v752 = vpop.permute.xlu0 %751
      %vm754 = vcmask 859848
      %755 = vst.msk [vmem:[#allocation2 + $0x8] sm:$0xff] %vm754, %v752
      %756 = vrot.lane.b32.xlu0 %v687, 43
      %v757 = vpop.permute.xlu0 %756
      %vm759 = vcmask 1007448
      %760 = vst.msk [vmem:[#allocation2 + $0x8] sm:$0xff] %vm759, %v757
      %761 = vrot.lane.b32.xlu0 %v687, 45
      %v762 = vpop.permute.xlu0 %761
      %vm764 = vcmask 1048552
      %765 = vst.msk [vmem:[#allocation2 + $0x8] sm:$0xff] %vm764, %v762
      %vm766 = vcmask 105472
      %767 = vst.msk [vmem:[#allocation2 + $0x10] sm:$0xff] %vm766, %v762
      %768 = vrot.lane.b32.xlu0 %v687, 47
      %v769 = vpop.permute.xlu0 %768
      %vm771 = vcmask 253048
      %772 = vst.msk [vmem:[#allocation2 + $0x10] sm:$0xff] %vm771, %v769
      %773 = vrot.lane.b32.xlu0 %v687, 49
      %v774 = vpop.permute.xlu0 %773
      %vm776 = vcmask 400648
      %777 = vst.msk [vmem:[#allocation2 + $0x10] sm:$0xff] %vm776, %v774
      %v778 = vld [vmem:[%s10] sm:$0xff]
      %v779 = vld [vmem:[%s10 + $0x8] sm:$0xff]
      %781 = vset.pattern.permute.xlu0 0
      %782 = vperm.xlu0 %781, %v778
      %v783 = vpop.permute.xlu0 %782
      %786 = vset.pattern.permute.xlu0 0
      %787 = vperm.xlu0 %786, %v779
      %v788 = vpop.permute.xlu0 %787
      %v790 = vld [vmem:[%s9] sm:$0xf]
      %v791 = vld [vmem:[%s9 + $0x4] sm:$0xf]
      %v792 = vld [vmem:[#allocation2] sm:$0xff]
      %v793 = vld [vmem:[#allocation2 + $0x8] sm:$0xff]
      %v794 = vld [vmem:[#allocation2 + $0x10] sm:$0xff]
      %v795 = vpack.c.bf16 %v792, %v792
      %v796 = vpack.c.bf16 %v793, %v793
      %v797 = vpack.c.bf16 %v794, %v794
      %v800 = vunpack.c.l.b16 %v790
      %v801 = vunpack.c.l.b16 %v791
      %v802 = vpack.c.b16 %v801, %v800
      %vm803 = vcmask 64512
      %v805 = vsel %vm803, %v802, 0
      %vm807 = vcmask 1043456
      %v809 = vsel %vm807, %v795, 0
      %v812 = vsel %vm807, %v796, 0
      %v815 = vsel %vm807, %v797, 0
      %817 = vmatprep.subr.bf16.mxu0 %v812
      %818 = vmatpush1.bf16.msra.mxu0 %v809
      %819 = vmatprep.subr.bf16.mxu0 0
      %820 = vmatpush1.bf16.msra.mxu0 0
      %821 = vmatprep.subr.bf16.mxu0 0
      %822 = vmatpush1.bf16.msra.mxu0 0
      %823 = vmatprep.subr.bf16.mxu0 0
      %824 = vmatpush1.bf16.msra.mxu0 0
      %825 = vmatprep.subr.bf16.mxu0 0
      %826 = vmatpush1.bf16.msra.mxu0 0
      %827 = vmatprep.subr.bf16.mxu0 0
      %828 = vmatpush1.bf16.msra.mxu0 0
      %829 = vmatprep.subr.bf16.mxu0 0
      %830 = vmatpush1.bf16.msra.mxu0 0
      %831 = vmatprep.subr.bf16.mxu0 0
      %832 = vmatpush1.bf16.msra.mxu0 0
      %833 = vmatprep.subr.bf16.mxu0 0
      %834 = vmatpush1.bf16.msra.mxu0 0
      %835 = vmatprep.subr.bf16.mxu0 0
      %836 = vmatpush1.bf16.msra.mxu0 0
      %837 = vmatprep.subr.bf16.mxu0 0
      %838 = vmatpush1.bf16.msra.mxu0 0
      %839 = vmatprep.subr.bf16.mxu0 0
      %840 = vmatpush1.bf16.msra.mxu0 0
      %841 = vmatprep.subr.bf16.mxu0 0
      %842 = vmatpush1.bf16.msra.mxu0 0
      %843 = vmatprep.subr.bf16.mxu0 0
      %844 = vmatpush1.bf16.msra.mxu0 0
      %845 = vmatprep.subr.bf16.mxu0 0
      %846 = vmatpush1.bf16.msra.mxu0 0
      %847 = vmatprep.subr.bf16.mxu0 0
      %848 = vmatpush1.bf16.msra.mxu0 0
      %849 = vmatprep.mubr.bf16.mxu0 0
      %850 = vmatmul.mubr.bf16.gmra.mrb[0].mxu0 %v805
      %v851 = vpop.f32.mrb[0].mxu0
      %v852 = vadd.f32 0.0, %v851
      %v853 = vpop.f32.mrb[0].mxu0
      %v854 = vadd.f32 0.0, %v853
      %v855 = vpop.f32.mrb[0].mxu0
      %v856 = vadd.f32 0.0, %v855
      %v857 = vpop.f32.mrb[0].mxu0
      %v858 = vadd.f32 0.0, %v857
      %859 = vdwg.mxu0
      %860 = vmatprep.subr.bf16.mxu0 0
      %861 = vmatpush1.bf16.msra.mxu0 %v815
      %862 = vmatprep.subr.bf16.mxu0 0
      %863 = vmatpush1.bf16.msra.mxu0 0
      %864 = vmatprep.subr.bf16.mxu0 0
      %865 = vmatpush1.bf16.msra.mxu0 0
      %866 = vmatprep.subr.bf16.mxu0 0
      %867 = vmatpush1.bf16.msra.mxu0 0
      %868 = vmatprep.subr.bf16.mxu0 0
      %869 = vmatpush1.bf16.msra.mxu0 0
      %870 = vmatprep.subr.bf16.mxu0 0
      %871 = vmatpush1.bf16.msra.mxu0 0
      %872 = vmatprep.subr.bf16.mxu0 0
      %873 = vmatpush1.bf16.msra.mxu0 0
      %874 = vmatprep.subr.bf16.mxu0 0
      %875 = vmatpush1.bf16.msra.mxu0 0
      %876 = vmatprep.subr.bf16.mxu0 0
      %877 = vmatpush1.bf16.msra.mxu0 0
      %878 = vmatprep.subr.bf16.mxu0 0
      %879 = vmatpush1.bf16.msra.mxu0 0
      %880 = vmatprep.subr.bf16.mxu0 0
      %881 = vmatpush1.bf16.msra.mxu0 0
      %882 = vmatprep.subr.bf16.mxu0 0
      %883 = vmatpush1.bf16.msra.mxu0 0
      %884 = vmatprep.subr.bf16.mxu0 0
      %885 = vmatpush1.bf16.msra.mxu0 0
      %886 = vmatprep.subr.bf16.mxu0 0
      %887 = vmatpush1.bf16.msra.mxu0 0
      %888 = vmatprep.subr.bf16.mxu0 0
      %889 = vmatpush1.bf16.msra.mxu0 0
      %890 = vmatprep.subr.bf16.mxu0 0
      %891 = vmatpush1.bf16.msra.mxu0 0
      %892 = vmatprep.mubr.bf16.mxu0 0
      %893 = vmatmul.mubr.bf16.gmra.mrb[0].mxu0 %v805
      %v894 = vpop.f32.mrb[0].mxu0
      %v895 = vadd.f32 0.0, %v894
      %v896 = vpop.f32.mrb[0].mxu0
      %v897 = vpop.f32.mrb[0].mxu0
      %v898 = vadd.f32 0.0, %v897
      %v899 = vpop.f32.mrb[0].mxu0
      %900 = vdwg.mxu0
      %v901 = vadd.f32 %v783, %v852
      %v902 = vadd.f32 %v783, %v854
      %v903 = vadd.f32 %v783, %v895
      %v904 = vadd.f32 %v788, %v856
      %v905 = vadd.f32 %v788, %v858
      %v906 = vadd.f32 %v788, %v898
      %v907 = vld [vmem:[%s9 + $0x8] sm:$0xf]
      %v908 = vld [vmem:[%s9 + $0xc] sm:$0xf]
      %v909 = vld [vmem:[#allocation2] sm:$0xff]
      %v910 = vld [vmem:[#allocation2 + $0x8] sm:$0xff]
      %v911 = vld [vmem:[#allocation2 + $0x10] sm:$0xff]
      %v912 = vld [vmem:[#allocation2 + $0x18] sm:$0xff]
      %v913 = vpack.c.bf16 %v909, %v909
      %v914 = vpack.c.bf16 %v910, %v910
      %v915 = vpack.c.bf16 %v911, %v911
      %v916 = vpack.c.bf16 %v912, %v912
      %v919 = vunpack.c.l.b16 %v907
      %v920 = vunpack.c.l.b16 %v908
      %v921 = vpack.c.b16 %v920, %v919
      %926 = vrot.lane.b32.xlu0 %v913, 127
      %v927 = vpop.permute.xlu0 %926
      %928 = vrot.lane.b32.xlu0 %v914, 127
      %v929 = vpop.permute.xlu0 %928
      %930 = vrot.lane.b32.xlu0 %v915, 127
      %v931 = vpop.permute.xlu0 %930
      %932 = vrot.lane.b32.xlu0 %v916, 127
      %v933 = vpop.permute.xlu0 %932
      %vm934 = vcmask 1039360
      %v935 = vsel %vm934, %v927, %v929
      %v936 = vsel %vm934, %v929, %v931
      %v937 = vsel %vm934, %v931, %v933
      %v939 = vsel %vm803, %v921, 0
      %v942 = vsel %vm807, %v935, 0
      %v945 = vsel %vm807, %v936, 0
      %v948 = vsel %vm807, %v937, 0
      %950 = vmatprep.subr.bf16.mxu0 %v945
      %951 = vmatpush1.bf16.msra.mxu0 %v942
      %952 = vmatprep.subr.bf16.mxu0 0
      %953 = vmatpush1.bf16.msra.mxu0 0
      %954 = vmatprep.subr.bf16.mxu0 0
      %955 = vmatpush1.bf16.msra.mxu0 0
      %956 = vmatprep.subr.bf16.mxu0 0
      %957 = vmatpush1.bf16.msra.mxu0 0
      %958 = vmatprep.subr.bf16.mxu0 0
      %959 = vmatpush1.bf16.msra.mxu0 0
      %960 = vmatprep.subr.bf16.mxu0 0
      %961 = vmatpush1.bf16.msra.mxu0 0
      %962 = vmatprep.subr.bf16.mxu0 0
      %963 = vmatpush1.bf16.msra.mxu0 0
      %964 = vmatprep.subr.bf16.mxu0 0
      %965 = vmatpush1.bf16.msra.mxu0 0
      %966 = vmatprep.subr.bf16.mxu0 0
      %967 = vmatpush1.bf16.msra.mxu0 0
      %968 = vmatprep.subr.bf16.mxu0 0
      %969 = vmatpush1.bf16.msra.mxu0 0
      %970 = vmatprep.subr.bf16.mxu0 0
      %971 = vmatpush1.bf16.msra.mxu0 0
      %972 = vmatprep.subr.bf16.mxu0 0
      %973 = vmatpush1.bf16.msra.mxu0 0
      %974 = vmatprep.subr.bf16.mxu0 0
      %975 = vmatpush1.bf16.msra.mxu0 0
      %976 = vmatprep.subr.bf16.mxu0 0
      %977 = vmatpush1.bf16.msra.mxu0 0
      %978 = vmatprep.subr.bf16.mxu0 0
      %979 = vmatpush1.bf16.msra.mxu0 0
      %980 = vmatprep.subr.bf16.mxu0 0
      %981 = vmatpush1.bf16.msra.mxu0 0
      %982 = vmatprep.mubr.bf16.mxu0 0
      %983 = vmatmul.mubr.bf16.gmra.mrb[0].mxu0 %v939
      %v984 = vpop.f32.mrb[0].mxu0
      %v985 = vadd.f32 0.0, %v984
      %v986 = vpop.f32.mrb[0].mxu0
      %v987 = vadd.f32 0.0, %v986
      %v988 = vpop.f32.mrb[0].mxu0
      %v989 = vadd.f32 0.0, %v988
      %v990 = vpop.f32.mrb[0].mxu0
      %v991 = vadd.f32 0.0, %v990
      %992 = vdwg.mxu0
      %993 = vmatprep.subr.bf16.mxu0 0
      %994 = vmatpush1.bf16.msra.mxu0 %v948
      %995 = vmatprep.subr.bf16.mxu0 0
      %996 = vmatpush1.bf16.msra.mxu0 0
      %997 = vmatprep.subr.bf16.mxu0 0
      %998 = vmatpush1.bf16.msra.mxu0 0
      %999 = vmatprep.subr.bf16.mxu0 0
      %1000 = vmatpush1.bf16.msra.mxu0 0
      %1001 = vmatprep.subr.bf16.mxu0 0
      %1002 = vmatpush1.bf16.msra.mxu0 0
      %1003 = vmatprep.subr.bf16.mxu0 0
      %1004 = vmatpush1.bf16.msra.mxu0 0
      %1005 = vmatprep.subr.bf16.mxu0 0
      %1006 = vmatpush1.bf16.msra.mxu0 0
      %1007 = vmatprep.subr.bf16.mxu0 0
      %1008 = vmatpush1.bf16.msra.mxu0 0
      %1009 = vmatprep.subr.bf16.mxu0 0
      %1010 = vmatpush1.bf16.msra.mxu0 0
      %1011 = vmatprep.subr.bf16.mxu0 0
      %1012 = vmatpush1.bf16.msra.mxu0 0
      %1013 = vmatprep.subr.bf16.mxu0 0
      %1014 = vmatpush1.bf16.msra.mxu0 0
      %1015 = vmatprep.subr.bf16.mxu0 0
      %1016 = vmatpush1.bf16.msra.mxu0 0
      %1017 = vmatprep.subr.bf16.mxu0 0
      %1018 = vmatpush1.bf16.msra.mxu0 0
      %1019 = vmatprep.subr.bf16.mxu0 0
      %1020 = vmatpush1.bf16.msra.mxu0 0
      %1021 = vmatprep.subr.bf16.mxu0 0
      %1022 = vmatpush1.bf16.msra.mxu0 0
      %1023 = vmatprep.subr.bf16.mxu0 0
      %1024 = vmatpush1.bf16.msra.mxu0 0
      %1025 = vmatprep.mubr.bf16.mxu0 0
      %1026 = vmatmul.mubr.bf16.gmra.mrb[0].mxu0 %v939
      %v1027 = vpop.f32.mrb[0].mxu0
      %v1028 = vadd.f32 0.0, %v1027
      %v1029 = vpop.f32.mrb[0].mxu0
      %v1030 = vpop.f32.mrb[0].mxu0
      %v1031 = vadd.f32 0.0, %v1030
      %v1032 = vpop.f32.mrb[0].mxu0
      %1033 = vdwg.mxu0
      %v1034 = vadd.f32 %v901, %v985
      %v1035 = vadd.f32 %v902, %v987
      %v1036 = vadd.f32 %v903, %v1028
      %v1037 = vadd.f32 %v904, %v989
      %v1038 = vadd.f32 %v905, %v991
      %v1039 = vadd.f32 %v906, %v1031
      %v1040 = vld [vmem:[%s9 + $0x10] sm:$0xf]
      %v1041 = vld [vmem:[%s9 + $0x14] sm:$0xf]
      %v1044 = vunpack.c.l.b16 %v1040
      %v1045 = vunpack.c.l.b16 %v1041
      %v1046 = vpack.c.b16 %v1045, %v1044
      %1047 = vrot.lane.b32.xlu0 %v913, 110
      %v1048 = vpop.permute.xlu0 %1047
      %1049 = vrot.lane.b32.xlu0 %v914, 110
      %v1050 = vpop.permute.xlu0 %1049
      %1051 = vrot.lane.b32.xlu0 %v915, 110
      %v1052 = vpop.permute.xlu0 %1051
      %1053 = vrot.lane.b32.xlu0 %v916, 110
      %v1054 = vpop.permute.xlu0 %1053
      %vm1055 = vcmask 900096
      %v1056 = vsel %vm1055, %v1048, %v1050
      %v1057 = vsel %vm1055, %v1050, %v1052
      %v1058 = vsel %vm1055, %v1052, %v1054
      %v1060 = vsel %vm803, %v1046, 0
      %v1063 = vsel %vm807, %v1056, 0
      %v1066 = vsel %vm807, %v1057, 0
      %v1069 = vsel %vm807, %v1058, 0
      %1071 = vmatprep.subr.bf16.mxu0 %v1066
      %1072 = vmatpush1.bf16.msra.mxu0 %v1063
      %1073 = vmatprep.subr.bf16.mxu0 0
      %1074 = vmatpush1.bf16.msra.mxu0 0
      %1075 = vmatprep.subr.bf16.mxu0 0
      %1076 = vmatpush1.bf16.msra.mxu0 0
      %1077 = vmatprep.subr.bf16.mxu0 0
      %1078 = vmatpush1.bf16.msra.mxu0 0
      %1079 = vmatprep.subr.bf16.mxu0 0
      %1080 = vmatpush1.bf16.msra.mxu0 0
      %1081 = vmatprep.subr.bf16.mxu0 0
      %1082 = vmatpush1.bf16.msra.mxu0 0
      %1083 = vmatprep.subr.bf16.mxu0 0
      %1084 = vmatpush1.bf16.msra.mxu0 0
      %1085 = vmatprep.subr.bf16.mxu0 0
      %1086 = vmatpush1.bf16.msra.mxu0 0
      %1087 = vmatprep.subr.bf16.mxu0 0
      %1088 = vmatpush1.bf16.msra.mxu0 0
      %1089 = vmatprep.subr.bf16.mxu0 0
      %1090 = vmatpush1.bf16.msra.mxu0 0
      %1091 = vmatprep.subr.bf16.mxu0 0
      %1092 = vmatpush1.bf16.msra.mxu0 0
      %1093 = vmatprep.subr.bf16.mxu0 0
      %1094 = vmatpush1.bf16.msra.mxu0 0
      %1095 = vmatprep.subr.bf16.mxu0 0
      %1096 = vmatpush1.bf16.msra.mxu0 0
      %1097 = vmatprep.subr.bf16.mxu0 0
      %1098 = vmatpush1.bf16.msra.mxu0 0
      %1099 = vmatprep.subr.bf16.mxu0 0
      %1100 = vmatpush1.bf16.msra.mxu0 0
      %1101 = vmatprep.subr.bf16.mxu0 0
      %1102 = vmatpush1.bf16.msra.mxu0 0
      %1103 = vmatprep.mubr.bf16.mxu0 0
      %1104 = vmatmul.mubr.bf16.gmra.mrb[0].mxu0 %v1060
      %v1105 = vpop.f32.mrb[0].mxu0
      %v1106 = vadd.f32 0.0, %v1105
      %v1107 = vpop.f32.mrb[0].mxu0
      %v1108 = vadd.f32 0.0, %v1107
      %v1109 = vpop.f32.mrb[0].mxu0
      %v1110 = vadd.f32 0.0, %v1109
      %v1111 = vpop.f32.mrb[0].mxu0
      %v1112 = vadd.f32 0.0, %v1111
      %1113 = vdwg.mxu0
      %1114 = vmatprep.subr.bf16.mxu0 0
      %1115 = vmatpush1.bf16.msra.mxu0 %v1069
      %1116 = vmatprep.subr.bf16.mxu0 0
      %1117 = vmatpush1.bf16.msra.mxu0 0
      %1118 = vmatprep.subr.bf16.mxu0 0
      %1119 = vmatpush1.bf16.msra.mxu0 0
      %1120 = vmatprep.subr.bf16.mxu0 0
      %1121 = vmatpush1.bf16.msra.mxu0 0
      %1122 = vmatprep.subr.bf16.mxu0 0
      %1123 = vmatpush1.bf16.msra.mxu0 0
      %1124 = vmatprep.subr.bf16.mxu0 0
      %1125 = vmatpush1.bf16.msra.mxu0 0
      %1126 = vmatprep.subr.bf16.mxu0 0
      %1127 = vmatpush1.bf16.msra.mxu0 0
      %1128 = vmatprep.subr.bf16.mxu0 0
      %1129 = vmatpush1.bf16.msra.mxu0 0
      %1130 = vmatprep.subr.bf16.mxu0 0
      %1131 = vmatpush1.bf16.msra.mxu0 0
      %1132 = vmatprep.subr.bf16.mxu0 0
      %1133 = vmatpush1.bf16.msra.mxu0 0
      %1134 = vmatprep.subr.bf16.mxu0 0
      %1135 = vmatpush1.bf16.msra.mxu0 0
      %1136 = vmatprep.subr.bf16.mxu0 0
      %1137 = vmatpush1.bf16.msra.mxu0 0
      %1138 = vmatprep.subr.bf16.mxu0 0
      %1139 = vmatpush1.bf16.msra.mxu0 0
      %1140 = vmatprep.subr.bf16.mxu0 0
      %1141 = vmatpush1.bf16.msra.mxu0 0
      %1142 = vmatprep.subr.bf16.mxu0 0
      %1143 = vmatpush1.bf16.msra.mxu0 0
      %1144 = vmatprep.subr.bf16.mxu0 0
      %1145 = vmatpush1.bf16.msra.mxu0 0
      %1146 = vmatprep.mubr.bf16.mxu0 0
      %1147 = vmatmul.mubr.bf16.gmra.mrb[0].mxu0 %v1060
      %v1148 = vpop.f32.mrb[0].mxu0
      %v1149 = vadd.f32 0.0, %v1148
      %v1150 = vpop.f32.mrb[0].mxu0
      %v1151 = vpop.f32.mrb[0].mxu0
      %v1152 = vadd.f32 0.0, %v1151
      %v1153 = vpop.f32.mrb[0].mxu0
      %1154 = vdwg.mxu0
      %v1155 = vadd.f32 %v1034, %v1106
      %v1156 = vadd.f32 %v1035, %v1108
      %v1157 = vadd.f32 %v1036, %v1149
      %v1158 = vadd.f32 %v1037, %v1110
      %v1159 = vadd.f32 %v1038, %v1112
      %v1160 = vadd.f32 %v1039, %v1152
      %v1161 = vld [vmem:[%s9 + $0x18] sm:$0xf]
      %v1162 = vld [vmem:[%s9 + $0x1c] sm:$0xf]
      %v1165 = vunpack.c.l.b16 %v1161
      %v1166 = vunpack.c.l.b16 %v1162
      %v1167 = vpack.c.b16 %v1166, %v1165
      %1168 = vrot.lane.b32.xlu0 %v913, 109
      %v1169 = vpop.permute.xlu0 %1168
      %1170 = vrot.lane.b32.xlu0 %v914, 109
      %v1171 = vpop.permute.xlu0 %1170
      %1172 = vrot.lane.b32.xlu0 %v915, 109
      %v1173 = vpop.permute.xlu0 %1172
      %1174 = vrot.lane.b32.xlu0 %v916, 109
      %v1175 = vpop.permute.xlu0 %1174
      %vm1176 = vcmask 891904
      %v1177 = vsel %vm1176, %v1169, %v1171
      %v1178 = vsel %vm1176, %v1171, %v1173
      %v1179 = vsel %vm1176, %v1173, %v1175
      %v1181 = vsel %vm803, %v1167, 0
      %v1184 = vsel %vm807, %v1177, 0
      %v1187 = vsel %vm807, %v1178, 0
      %v1190 = vsel %vm807, %v1179, 0
      %1192 = vmatprep.subr.bf16.mxu0 %v1187
      %1193 = vmatpush1.bf16.msra.mxu0 %v1184
      %1194 = vmatprep.subr.bf16.mxu0 0
      %1195 = vmatpush1.bf16.msra.mxu0 0
      %1196 = vmatprep.subr.bf16.mxu0 0
      %1197 = vmatpush1.bf16.msra.mxu0 0
      %1198 = vmatprep.subr.bf16.mxu0 0
      %1199 = vmatpush1.bf16.msra.mxu0 0
      %1200 = vmatprep.subr.bf16.mxu0 0
      %1201 = vmatpush1.bf16.msra.mxu0 0
      %1202 = vmatprep.subr.bf16.mxu0 0
      %1203 = vmatpush1.bf16.msra.mxu0 0
      %1204 = vmatprep.subr.bf16.mxu0 0
      %1205 = vmatpush1.bf16.msra.mxu0 0
      %1206 = vmatprep.subr.bf16.mxu0 0
      %1207 = vmatpush1.bf16.msra.mxu0 0
      %1208 = vmatprep.subr.bf16.mxu0 0
      %1209 = vmatpush1.bf16.msra.mxu0 0
      %1210 = vmatprep.subr.bf16.mxu0 0
      %1211 = vmatpush1.bf16.msra.mxu0 0
      %1212 = vmatprep.subr.bf16.mxu0 0
      %1213 = vmatpush1.bf16.msra.mxu0 0
      %1214 = vmatprep.subr.bf16.mxu0 0
      %1215 = vmatpush1.bf16.msra.mxu0 0
      %1216 = vmatprep.subr.bf16.mxu0 0
      %1217 = vmatpush1.bf16.msra.mxu0 0
      %1218 = vmatprep.subr.bf16.mxu0 0
      %1219 = vmatpush1.bf16.msra.mxu0 0
      %1220 = vmatprep.subr.bf16.mxu0 0
      %1221 = vmatpush1.bf16.msra.mxu0 0
      %1222 = vmatprep.subr.bf16.mxu0 0
      %1223 = vmatpush1.bf16.msra.mxu0 0
      %1224 = vmatprep.mubr.bf16.mxu0 0
      %1225 = vmatmul.mubr.bf16.gmra.mrb[0].mxu0 %v1181
      %v1226 = vpop.f32.mrb[0].mxu0
      %v1227 = vadd.f32 0.0, %v1226
      %v1228 = vpop.f32.mrb[0].mxu0
      %v1229 = vadd.f32 0.0, %v1228
      %v1230 = vpop.f32.mrb[0].mxu0
      %v1231 = vadd.f32 0.0, %v1230
      %v1232 = vpop.f32.mrb[0].mxu0
      %v1233 = vadd.f32 0.0, %v1232
      %1234 = vdwg.mxu0
      %1235 = vmatprep.subr.bf16.mxu0 0
      %1236 = vmatpush1.bf16.msra.mxu0 %v1190
      %1237 = vmatprep.subr.bf16.mxu0 0
      %1238 = vmatpush1.bf16.msra.mxu0 0
      %1239 = vmatprep.subr.bf16.mxu0 0
      %1240 = vmatpush1.bf16.msra.mxu0 0
      %1241 = vmatprep.subr.bf16.mxu0 0
      %1242 = vmatpush1.bf16.msra.mxu0 0
      %1243 = vmatprep.subr.bf16.mxu0 0
      %1244 = vmatpush1.bf16.msra.mxu0 0
      %1245 = vmatprep.subr.bf16.mxu0 0
      %1246 = vmatpush1.bf16.msra.mxu0 0
      %1247 = vmatprep.subr.bf16.mxu0 0
      %1248 = vmatpush1.bf16.msra.mxu0 0
      %1249 = vmatprep.subr.bf16.mxu0 0
      %1250 = vmatpush1.bf16.msra.mxu0 0
      %1251 = vmatprep.subr.bf16.mxu0 0
      %1252 = vmatpush1.bf16.msra.mxu0 0
      %1253 = vmatprep.subr.bf16.mxu0 0
      %1254 = vmatpush1.bf16.msra.mxu0 0
      %1255 = vmatprep.subr.bf16.mxu0 0
      %1256 = vmatpush1.bf16.msra.mxu0 0
      %1257 = vmatprep.subr.bf16.mxu0 0
      %1258 = vmatpush1.bf16.msra.mxu0 0
      %1259 = vmatprep.subr.bf16.mxu0 0
      %1260 = vmatpush1.bf16.msra.mxu0 0
      %1261 = vmatprep.subr.bf16.mxu0 0
      %1262 = vmatpush1.bf16.msra.mxu0 0
      %1263 = vmatprep.subr.bf16.mxu0 0
      %1264 = vmatpush1.bf16.msra.mxu0 0
      %1265 = vmatprep.subr.bf16.mxu0 0
      %1266 = vmatpush1.bf16.msra.mxu0 0
      %1267 = vmatprep.mubr.bf16.mxu0 0
      %1268 = vmatmul.mubr.bf16.gmra.mrb[0].mxu0 %v1181
      %v1269 = vpop.f32.mrb[0].mxu0
      %v1270 = vadd.f32 0.0, %v1269
      %v1271 = vpop.f32.mrb[0].mxu0
      %v1272 = vpop.f32.mrb[0].mxu0
      %v1273 = vadd.f32 0.0, %v1272
      %v1274 = vpop.f32.mrb[0].mxu0
      %1275 = vdwg.mxu0
      %v1276 = vadd.f32 %v1155, %v1227
      %v1277 = vadd.f32 %v1156, %v1229
      %v1278 = vadd.f32 %v1157, %v1270
      %v1279 = vadd.f32 %v1158, %v1231
      %v1280 = vadd.f32 %v1159, %v1233
      %v1281 = vadd.f32 %v1160, %v1273
      %v1282 = vmax.f32 %v1276, 0.0
      %v1283 = vmax.f32 %v1277, 0.0
      %v1284 = vmax.f32 %v1278, 0.0
      %v1285 = vmax.f32 %v1279, 0.0
      %v1286 = vmax.f32 %v1280, 0.0
      %v1287 = vmax.f32 %v1281, 0.0
      %1288 = vst [vmem:[%s386] sm:$0xff] %v1282
      %1289 = vst [vmem:[%s386 + $0x8] sm:$0xff] %v1283
      %1290 = vst [vmem:[%s386 + $0x10] sm:$0xff] %v1284
      %1291 = vst [vmem:[%s386 + $0x18] sm:$0xff] %v1285
      %1292 = vst [vmem:[%s386 + $0x20] sm:$0xff] %v1286
      %1293 = vst [vmem:[%s386 + $0x28] sm:$0xff] %v1287
      %p1294 = scmp.lt.s32.totalorder %s22, 1
      %s1295 = scalar_select %p1294, %s22, 1
      %s1296 = smul.addr %s1295, 6
      %s1297 = smul.addr %s1296, 8
      %s1298 = scalar_lea.vmem %s11, %s1297
      // Predicated region
      $region65: #{conv_decoder_forward.1} parent=63 // pred_check
        %p1299 = pneg %p276
      $region66: #{conv_decoder_forward.1} parent=63 // pred_check_branch
        %1301 = sbr.rel (%p1299) target = $region68
      $region67: #{conv_decoder_forward.1} parent=63 // pred_region
        _
      $region68: #{conv_decoder_forward.1} parent=63 // pred_fallthru
        _
    $region64: #{conv_decoder_forward.1} parent=5 // pred_fallthru
      _
    %p1302 = scmp.le.s32.totalorder 2, %s17
    // Predicated region
    $region69: #{conv_decoder_forward.1} parent=5 // pred_check
      %p1303 = pneg %p1302
    $region70: #{conv_decoder_forward.1} parent=5 // pred_check_branch
      %1305 = sbr.rel (%p1303) target = $region72
    $region71: #{conv_decoder_forward.1} parent=5 // pred_region
      %s1306 = ssub.s32 %s17, 2
      // Predicated region
      $region73: #{conv_decoder_forward.1} parent=71 // pred_check
        %p1307 = pneg %p282
      $region74: #{conv_decoder_forward.1} parent=71 // pred_check_branch
        %1309 = sbr.rel (%p1307) target = $region76
      $region75: #{conv_decoder_forward.1} parent=71 // pred_region
        %p1310 = scmp.lt.s32.totalorder %s23, 1
        %s1311 = scalar_select %p1310, %s23, 1
        %s1312 = smul.addr %s1311, 6
        %s1313 = smul.addr %s1312, 8
        %s1314 = scalar_lea.vmem %s11, %s1313
      $region76: #{conv_decoder_forward.1} parent=71 // pred_fallthru
        _
    $region72: #{conv_decoder_forward.1} parent=5 // pred_fallthru
      _
  $region6: #{conv_decoder_forward.1} parent=0 // loop_footer
    %s21 = sadd.s32 1, %s17
  $region7: #{conv_decoder_forward.1} parent=0 // loop_footer_branch
    %16 = sbr.rel target = $region3
  $region8: #{conv_decoder_forward.1} parent=0 // loop_exit
    _

</llo_original>
